<compile_context>
chip_gen: v5e
topology: v5e:2x2
jax: 0.10.0
libtpu: 0.0.40
codegen_flags: <defaults>
</compile_context>

<pallas_src>
import jax
import jax.numpy as jnp
from jax.experimental import pallas as pl
from jax.experimental.pallas import tpu as pltpu


_STRIPS = 8                      # batch strips folded onto the sublane axis (f32)
_LANES = 128                     # lane width
_GRAN = _STRIPS * _LANES         # minimum batch granularity = 1024 samples
_LANE_CHUNK = 2048               # in-kernel compute chunk (lanes); bounds temporaries


def _mine2_kernel(x_ref, w1_ref, b1_ref, w2_ref, b2_ref, w3_ref, b3_ref, o_ref):
    """x_ref: (in*8, TL), o_ref: (8, TL); weights are block-diagonal 8-strip form."""
    hp = jax.lax.Precision.HIGHEST
    w1 = w1_ref[...]; b1 = b1_ref[...]
    w2 = w2_ref[...]; b2 = b2_ref[...]
    w3 = w3_ref[...]; b3 = b3_ref[...]

    tl = x_ref.shape[1]
    ch = min(_LANE_CHUNK, tl)

    def run(lo, width):
        xc = x_ref[:, lo:lo + width]                                         # (16, w)
        h = jnp.dot(w1, xc, preferred_element_type=jnp.float32, precision=hp) + b1
        h = jnp.maximum(h, 0.0)                                              # (80, w)
        h = jnp.dot(w2, h, preferred_element_type=jnp.float32, precision=hp) + b2
        h = jnp.maximum(h, 0.0)                                              # (80, w)
        y = jnp.dot(w3, h, preferred_element_type=jnp.float32, precision=hp) + b3
        o_ref[:, lo:lo + width] = y                                          # (8, w)

    n_full = tl // ch
    for c in range(n_full):            # static unroll; slices are static and aligned
        run(c * ch, ch)
    rem = tl - n_full * ch             # multiple of 128 by construction
    if rem:
        run(n_full * ch, rem)


def mine2_forward(x, params, *, block_b=262144):
    """x: (B, input_size) float32 -> (B, 1) float32.

    block_b: batch samples per grid step (multiple of 1024).  Default 256K so a
    grid step moves ~3 MB of HBM traffic while pipeline VMEM stays ~10 MB
    (well inside v7x's 64 MiB; v5e/v6e have more headroom still).
    """
    assert block_b % _GRAN == 0 and block_b > 0
    B, F = x.shape
    S = _STRIPS
    H = params["w1"].shape[0]

    # ---- tile / grid selection -------------------------------------------
    b_aligned = pl.cdiv(B, _GRAN) * _GRAN
    tb = min(block_b, b_aligned)
    # v7x has 2 TensorCores: prefer >= 2 grid steps whenever the batch allows.
    if tb == b_aligned and b_aligned >= 2 * _GRAN:
        tb = pl.cdiv(b_aligned // 2, _GRAN) * _GRAN
    bp = pl.cdiv(B, tb) * tb
    grid = (bp // tb,)
    tl = tb // S                        # lanes per grid step (multiple of 128)
    cb = bp // S                        # total packed columns

    # ---- pack x: (B, F) -> (F*8, bp/8), fully sublane- and lane-dense ------
    # Strip s holds samples [s*cb, (s+1)*cb); packed row index = f*8 + s.
    # TODO(synk): this pad+transpose+reshape is one fused XLA copy over x; it
    # disappears entirely if the caller can supply x feature-major / pre-packed.
    xp = jnp.pad(x.astype(jnp.float32), ((0, bp - B), (0, 0)))               # (bp, F)
    x_in = xp.T.reshape(F, S, cb).reshape(F * S, cb)                          # (F*8, cb)

    # ---- block-diagonal 8-strip weights (tiny; built once per call) --------
    w1 = params["w1"].astype(jnp.float32)                   # (H, F)
    b1 = params["b1"].astype(jnp.float32).reshape(H)
    w2 = params["w2"].astype(jnp.float32)                   # (H, H)
    b2 = params["b2"].astype(jnp.float32).reshape(H)
    w3 = params["w3"].astype(jnp.float32).reshape(1, H)     # (1, H)
    b3 = params["b3"].astype(jnp.float32).reshape(1)

    eye = jnp.eye(S, dtype=jnp.float32)
    W1 = (eye[:, None, None, :] * w1[None, :, :, None]).reshape(S * H, F * S)  # (80, 16)
    B1 = jnp.tile(b1, S).reshape(S * H, 1)                                     # (80, 1)
    W2 = (eye[:, None, :, None] * w2[None, :, None, :]).reshape(S * H, S * H)  # (80, 80)
    B2 = jnp.tile(b2, S).reshape(S * H, 1)                                     # (80, 1)
    W3 = (eye[:, :, None] * w3[0][None, None, :]).reshape(S, S * H)            # (8, 80)
    B3 = jnp.broadcast_to(b3.reshape(1, 1), (S, 1))                            # (8, 1)

    out = pl.pallas_call(
        _mine2_kernel,
        out_shape=jax.ShapeDtypeStruct((S, cb), jnp.float32),
        grid_spec=pltpu.PrefetchScalarGridSpec(
            num_scalar_prefetch=0,
            grid=grid,
            in_specs=[
                # x: streamed, sublane/lane dense.  (On v5e, if profiling shows
                # exposed input DMA, add pipeline_mode=pl.Buffered(3) here.)
                pl.BlockSpec((F * S, tl), lambda i: (0, i)),
                # weights / biases: full-array, VMEM-resident across the grid.
                pl.BlockSpec((S * H, F * S), lambda i: (0, 0)),
                pl.BlockSpec((S * H, 1), lambda i: (0, 0)),
                pl.BlockSpec((S * H, S * H), lambda i: (0, 0)),
                pl.BlockSpec((S * H, 1), lambda i: (0, 0)),
                pl.BlockSpec((S, S * H), lambda i: (0, 0)),
                pl.BlockSpec((S, 1), lambda i: (0, 0)),
            ],
            out_specs=pl.BlockSpec((S, tl), lambda i: (0, i)),     # lane/sublane dense
        ),
        compiler_params=pltpu.CompilerParams(
            dimension_semantics=("parallel",),       # shard batch tiles across TCs
            vmem_limit_bytes=48 * 1024 * 1024,       # below v7x's 64 MiB physical VMEM
        ),
    )(x_in, W1, B1, W2, B2, W3, B3)

    # Unscramble: out[s, c] is the prediction for sample s*cb + c.
    return out.reshape(bp)[:B].reshape(B, 1)


def init_params(key, input_size=2, hidden_units=10):
    """PyTorch nn.Linear default init: U[-1/sqrt(fan_in), +1/sqrt(fan_in)]."""
    ks = jax.random.split(key, 6)

    def linear(kw, kb, fan_in, fan_out):
        bound = 1.0 / jnp.sqrt(jnp.float32(fan_in))
        w = jax.random.uniform(kw, (fan_out, fan_in), jnp.float32, -bound, bound)
        b = jax.random.uniform(kb, (fan_out,), jnp.float32, -bound, bound)
        return w, b

    w1, b1 = linear(ks[0], ks[1], input_size, hidden_units)
    w2, b2 = linear(ks[2], ks[3], hidden_units, hidden_units)
    w3, b3 = linear(ks[4], ks[5], hidden_units, 1)
    return {"w1": w1, "b1": b1, "w2": w2, "b2": b2, "w3": w3, "b3": b3}


def reference_forward(x, p):
    hp = jax.lax.Precision.HIGHEST
    h1 = jnp.maximum(jnp.dot(x, p["w1"].T, precision=hp) + p["b1"], 0.0)
    h2 = jnp.maximum(jnp.dot(h1, p["w2"].T, precision=hp) + p["b2"], 0.0)
    return jnp.dot(h2, p["w3"].T, precision=hp) + p["b3"]


if __name__ == "__main__":
    key = jax.random.PRNGKey(0)
    k_params, k1, k2, k3 = jax.random.split(key, 4)

    input_size, hidden_units = 2, 10
    params = init_params(k_params, input_size, hidden_units)

    fwd = jax.jit(mine2_forward, static_argnames=("block_b",))

    # Small batch matching the module defaults (single grid step).
    x_small = jax.random.normal(k1, (8, input_size), jnp.float32)
    out_small = jax.block_until_ready(fwd(x_small, params, block_b=262144))
    ref_small = reference_forward(x_small, params)
    assert out_small.shape == (8, 1), out_small.shape
    assert jnp.allclose(out_small, ref_small, atol=1e-5, rtol=1e-5), "mismatch (B=8)"

    # Ragged batch + multi-step grid: exercises tiling, tail padding and the
    # VMEM-resident weights across grid iterations.
    x_mid = jax.random.normal(k2, (3000, input_size), jnp.float32)
    out_mid = jax.block_until_ready(fwd(x_mid, params, block_b=2048))
    ref_mid = reference_forward(x_mid, params)
    assert out_mid.shape == (3000, 1), out_mid.shape
    assert jnp.allclose(out_mid, ref_mid, atol=1e-5, rtol=1e-5), "mismatch (B=3000)"

    # Default large-tile path + the ">=2 grid steps" split heuristic (v7x 2 TCs).
    x_big = jax.random.normal(k3, (2500, input_size), jnp.float32)
    out_big = jax.block_until_ready(fwd(x_big, params, block_b=262144))
    ref_big = reference_forward(x_big, params)
    assert out_big.shape == (2500, 1), out_big.shape
    assert jnp.allclose(out_big, ref_big, atol=1e-5, rtol=1e-5), "mismatch (B=2500)"

    print("KERNEL_OK")
</pallas_src>

<mosaic_0001>
module attributes {stable_mosaic.version = 11 : i64} {
  func.func @_mine2_kernel(%arg0: i32, %arg1: memref<16x128xf32, #tpu.memory_space<vmem>>, %arg2: memref<80x16xf32, #tpu.memory_space<vmem>>, %arg3: memref<80x1xf32, #tpu.memory_space<vmem>>, %arg4: memref<80x80xf32, #tpu.memory_space<vmem>>, %arg5: memref<80x1xf32, #tpu.memory_space<vmem>>, %arg6: memref<8x80xf32, #tpu.memory_space<vmem>>, %arg7: memref<8x1xf32, #tpu.memory_space<vmem>>, %arg8: memref<8x128xf32, #tpu.memory_space<vmem>>) attributes {dimension_semantics = [#tpu.dimension_semantics<parallel>], iteration_bounds = array<i64: 1>, scalar_prefetch = 0 : i64, scratch_operands = 0 : i64, tpu.core_type = #tpu.core_type<tc>, window_params = [{transform_indices = @transform_0, window_bounds = array<i64: 16, 128>}, {pipeline_mode = #tpu.pipeline_mode<synchronous>, transform_indices = @transform_1, window_bounds = array<i64: 80, 16>}, {pipeline_mode = #tpu.pipeline_mode<synchronous>, transform_indices = @transform_2, window_bounds = array<i64: 80, 1>}, {pipeline_mode = #tpu.pipeline_mode<synchronous>, transform_indices = @transform_3, window_bounds = array<i64: 80, 80>}, {pipeline_mode = #tpu.pipeline_mode<synchronous>, transform_indices = @transform_4, window_bounds = array<i64: 80, 1>}, {pipeline_mode = #tpu.pipeline_mode<synchronous>, transform_indices = @transform_5, window_bounds = array<i64: 8, 80>}, {pipeline_mode = #tpu.pipeline_mode<synchronous>, transform_indices = @transform_6, window_bounds = array<i64: 8, 1>}, {transform_indices = @transform_7, window_bounds = array<i64: 8, 128>}]} {
    %c0 = arith.constant 0 : index
    %c0_0 = arith.constant 0 : index
    %0 = vector.load %arg2[%c0, %c0_0] : memref<80x16xf32, #tpu.memory_space<vmem>>, vector<80x16xf32>
    %c0_1 = arith.constant 0 : index
    %c0_2 = arith.constant 0 : index
    %1 = vector.load %arg3[%c0_1, %c0_2] : memref<80x1xf32, #tpu.memory_space<vmem>>, vector<80x1xf32>
    %c0_3 = arith.constant 0 : index
    %c0_4 = arith.constant 0 : index
    %2 = vector.load %arg4[%c0_3, %c0_4] : memref<80x80xf32, #tpu.memory_space<vmem>>, vector<80x80xf32>
    %c0_5 = arith.constant 0 : index
    %c0_6 = arith.constant 0 : index
    %3 = vector.load %arg5[%c0_5, %c0_6] : memref<80x1xf32, #tpu.memory_space<vmem>>, vector<80x1xf32>
    %c0_7 = arith.constant 0 : index
    %c0_8 = arith.constant 0 : index
    %4 = vector.load %arg6[%c0_7, %c0_8] : memref<8x80xf32, #tpu.memory_space<vmem>>, vector<8x80xf32>
    %c0_9 = arith.constant 0 : index
    %c0_10 = arith.constant 0 : index
    %5 = vector.load %arg7[%c0_9, %c0_10] : memref<8x1xf32, #tpu.memory_space<vmem>>, vector<8x1xf32>
    %c0_11 = arith.constant 0 : index
    %c0_12 = arith.constant 0 : index
    %6 = vector.load %arg1[%c0_11, %c0_12] : memref<16x128xf32, #tpu.memory_space<vmem>>, vector<16x128xf32>
    %cst = arith.constant dense<0.000000e+00> : vector<80x128xf32>
    %7 = tpu.matmul %0, %6, %cst {dimension_numbers = #tpu.dot_dimension_numbers<[1], [0], [0], [1], [0, 0, 1, 1], [], []>, precision = #tpu.contract_precision<fp32>} : vector<80x16xf32>, vector<16x128xf32>, vector<80x128xf32> -> vector<80x128xf32>
    %8 = vector.broadcast %1 : vector<80x1xf32> to vector<80x128xf32>
    %9 = arith.addf %7, %8 : vector<80x128xf32>
    %cst_13 = arith.constant 0.000000e+00 : f32
    %10 = vector.broadcast %cst_13 : f32 to vector<80x128xf32>
    %11 = arith.maximumf %9, %10 : vector<80x128xf32>
    %cst_14 = arith.constant dense<0.000000e+00> : vector<80x128xf32>
    %12 = tpu.matmul %2, %11, %cst_14 {dimension_numbers = #tpu.dot_dimension_numbers<[1], [0], [0], [1], [0, 0, 1, 1], [], []>, precision = #tpu.contract_precision<fp32>} : vector<80x80xf32>, vector<80x128xf32>, vector<80x128xf32> -> vector<80x128xf32>
    %13 = vector.broadcast %3 : vector<80x1xf32> to vector<80x128xf32>
    %14 = arith.addf %12, %13 : vector<80x128xf32>
    %cst_15 = arith.constant 0.000000e+00 : f32
    %15 = vector.broadcast %cst_15 : f32 to vector<80x128xf32>
    %16 = arith.maximumf %14, %15 : vector<80x128xf32>
    %cst_16 = arith.constant dense<0.000000e+00> : vector<8x128xf32>
    %17 = tpu.matmul %4, %16, %cst_16 {dimension_numbers = #tpu.dot_dimension_numbers<[1], [0], [0], [1], [0, 0, 1, 1], [], []>, precision = #tpu.contract_precision<fp32>} : vector<8x80xf32>, vector<80x128xf32>, vector<8x128xf32> -> vector<8x128xf32>
    %18 = vector.broadcast %5 : vector<8x1xf32> to vector<8x128xf32>
    %19 = arith.addf %17, %18 : vector<8x128xf32>
    %c0_17 = arith.constant 0 : index
    %c0_18 = arith.constant 0 : index
    %20 = vector.load %arg8[%c0_17, %c0_18] : memref<8x128xf32, #tpu.memory_space<vmem>>, vector<8x128xf32>
    tpu.vector_store %arg8[%c0_17, %c0_18], %19 {strides = array<i32>} : memref<8x128xf32, #tpu.memory_space<vmem>>, vector<8x128xf32>,
    return
  }
  func.func @transform_0(%arg0: i32) -> (i32, i32) {
    %c0_i32 = arith.constant 0 : i32
    %c0_i32_0 = arith.constant 0 : i32
    return %c0_i32, %arg0 : i32, i32
  }
  func.func @transform_1(%arg0: i32) -> (i32, i32) {
    %c0_i32 = arith.constant 0 : i32
    %c0_i32_0 = arith.constant 0 : i32
    %c0_i32_1 = arith.constant 0 : i32
    return %c0_i32, %c0_i32_0 : i32, i32
  }
  func.func @transform_2(%arg0: i32) -> (i32, i32) {
    %c0_i32 = arith.constant 0 : i32
    %c0_i32_0 = arith.constant 0 : i32
    %c0_i32_1 = arith.constant 0 : i32
    return %c0_i32, %c0_i32_0 : i32, i32
  }
  func.func @transform_3(%arg0: i32) -> (i32, i32) {
    %c0_i32 = arith.constant 0 : i32
    %c0_i32_0 = arith.constant 0 : i32
    %c0_i32_1 = arith.constant 0 : i32
    return %c0_i32, %c0_i32_0 : i32, i32
  }
  func.func @transform_4(%arg0: i32) -> (i32, i32) {
    %c0_i32 = arith.constant 0 : i32
    %c0_i32_0 = arith.constant 0 : i32
    %c0_i32_1 = arith.constant 0 : i32
    return %c0_i32, %c0_i32_0 : i32, i32
  }
  func.func @transform_5(%arg0: i32) -> (i32, i32) {
    %c0_i32 = arith.constant 0 : i32
    %c0_i32_0 = arith.constant 0 : i32
    %c0_i32_1 = arith.constant 0 : i32
    return %c0_i32, %c0_i32_0 : i32, i32
  }
  func.func @transform_6(%arg0: i32) -> (i32, i32) {
    %c0_i32 = arith.constant 0 : i32
    %c0_i32_0 = arith.constant 0 : i32
    %c0_i32_1 = arith.constant 0 : i32
    return %c0_i32, %c0_i32_0 : i32, i32
  }
  func.func @transform_7(%arg0: i32) -> (i32, i32) {
    %c0_i32 = arith.constant 0 : i32
    %c0_i32_0 = arith.constant 0 : i32
    return %c0_i32, %arg0 : i32, i32
  }
}

</mosaic_0001>

<llo_original>
// kernel: tile.0
$region0: #{tile.0}
  %s0 = inlined_call_operand.vmem [shape: f32[8,10], index: 0, kind: input, shape index: {}]
  %s1 = inlined_call_operand.vmem [shape: f32[80,1], index: 1, kind: output, shape index: {}]
  %v2 = vld [vmem:[%s0] sm:$0xff]
  %vm3 = vcmask 7168
  %4 = vst.msk [vmem:[%s1] ss:$10 sm:$0xff] %vm3, %v2
  %v5 = vld.sshfl [vmem:[%s0] sm:$0xff pattern:$0x36251470]
  %6 = vrot.lane.b32.xlu0 %v5, 127
  %v7 = vpop.permute.xlu0 %6
  %vm8 = vcmask 7168
  %s9 = scalar_lea.vmem %s1, 1
  %10 = vst.msk [vmem:[%s9] ss:$70 sm:$0x3] %vm8, %v7
  %s11 = scalar_lea.vmem %s1, 101
  %12 = vst.msk [vmem:[%s11] ss:$-30 sm:$0xc] %vm8, %v7
  %s13 = scalar_lea.vmem %s1, 171
  %14 = vst.msk [vmem:[%s13] ss:$-30 sm:$0x30] %vm8, %v7
  %s15 = scalar_lea.vmem %s1, 241
  %16 = vst.msk [vmem:[%s15] ss:$-30 sm:$0xc0] %vm8, %v7
  %v17 = vld.sshfl [vmem:[%s0] sm:$0xff pattern:$0x62514703]
  %18 = vrot.lane.b32.xlu0 %v17, 126
  %v19 = vpop.permute.xlu0 %18
  %vm20 = vcmask 7168
  %s21 = scalar_lea.vmem %s1, 32
  %22 = vst.msk [vmem:[%s21] ss:$-30 sm:$0x3] %vm20, %v19
  %s23 = scalar_lea.vmem %s1, 132
  %24 = vst.msk [vmem:[%s23] ss:$-30 sm:$0x1c] %vm20, %v19
  %s25 = scalar_lea.vmem %s1, 202
  %26 = vst.msk [vmem:[%s25] ss:$-30 sm:$0x60] %vm20, %v19
  %s27 = scalar_lea.vmem %s1, 55
  %28 = vst.msk [vmem:[%s27] sm:$0x80] %vm20, %v19
  %v29 = vld.sshfl [vmem:[%s0] sm:$0xff pattern:$0x62514703]
  %30 = vrot.lane.b32.xlu0 %v29, 125
  %v31 = vpop.permute.xlu0 %30
  %vm32 = vcmask 7168
  %s33 = scalar_lea.vmem %s1, 33
  %34 = vst.msk [vmem:[%s33] ss:$-30 sm:$0x3] %vm32, %v31
  %s35 = scalar_lea.vmem %s1, 133
  %36 = vst.msk [vmem:[%s35] ss:$-30 sm:$0x1c] %vm32, %v31
  %s37 = scalar_lea.vmem %s1, 203
  %38 = vst.msk [vmem:[%s37] ss:$-30 sm:$0x60] %vm32, %v31
  %s39 = scalar_lea.vmem %s1, 56
  %40 = vst.msk [vmem:[%s39] sm:$0x80] %vm32, %v31
  %v41 = vld.sshfl [vmem:[%s0] sm:$0xff pattern:$0x25147036]
  %42 = vrot.lane.b32.xlu0 %v41, 124
  %v43 = vpop.permute.xlu0 %42
  %vm44 = vcmask 7168
  %s45 = scalar_lea.vmem %s1, 64
  %46 = vst.msk [vmem:[%s45] ss:$-30 sm:$0x7] %vm44, %v43
  %s47 = scalar_lea.vmem %s1, 164
  %48 = vst.msk [vmem:[%s47] ss:$-30 sm:$0x38] %vm44, %v43
  %s49 = scalar_lea.vmem %s1, 234
  %50 = vst.msk [vmem:[%s49] ss:$-30 sm:$0xc0] %vm44, %v43
  %v51 = vld.sshfl [vmem:[%s0] sm:$0xff pattern:$0x25147036]
  %52 = vrot.lane.b32.xlu0 %v51, 123
  %v53 = vpop.permute.xlu0 %52
  %vm54 = vcmask 7168
  %s55 = scalar_lea.vmem %s1, 65
  %56 = vst.msk [vmem:[%s55] ss:$-30 sm:$0x7] %vm54, %v53
  %s57 = scalar_lea.vmem %s1, 165
  %58 = vst.msk [vmem:[%s57] ss:$-30 sm:$0x38] %vm54, %v53
  %s59 = scalar_lea.vmem %s1, 235
  %60 = vst.msk [vmem:[%s59] ss:$-30 sm:$0xc0] %vm54, %v53
  %v61 = vld.sshfl [vmem:[%s0] sm:$0xff pattern:$0x25147036]
  %62 = vrot.lane.b32.xlu0 %v61, 122
  %v63 = vpop.permute.xlu0 %62
  %vm64 = vcmask 7168
  %s65 = scalar_lea.vmem %s1, 66
  %66 = vst.msk [vmem:[%s65] ss:$-30 sm:$0x7] %vm64, %v63
  %s67 = scalar_lea.vmem %s1, 166
  %68 = vst.msk [vmem:[%s67] ss:$-30 sm:$0x38] %vm64, %v63
  %s69 = scalar_lea.vmem %s1, 236
  %70 = vst.msk [vmem:[%s69] ss:$-30 sm:$0xc0] %vm64, %v63
  %v71 = vld.sshfl [vmem:[%s0] sm:$0xff pattern:$0x25147036]
  %72 = vrot.lane.b32.xlu0 %v71, 121
  %v73 = vpop.permute.xlu0 %72
  %vm74 = vcmask 7168
  %s75 = scalar_lea.vmem %s1, 67
  %76 = vst.msk [vmem:[%s75] ss:$-30 sm:$0x7] %vm74, %v73
  %s77 = scalar_lea.vmem %s1, 167
  %78 = vst.msk [vmem:[%s77] ss:$-30 sm:$0x38] %vm74, %v73
  %s79 = scalar_lea.vmem %s1, 237
  %80 = vst.msk [vmem:[%s79] ss:$-30 sm:$0xc0] %vm74, %v73
  %v81 = vld.sshfl [vmem:[%s0] sm:$0xff pattern:$0x25147036]
  %82 = vrot.lane.b32.xlu0 %v81, 120
  %v83 = vpop.permute.xlu0 %82
  %vm84 = vcmask 7168
  %s85 = scalar_lea.vmem %s1, 68
  %86 = vst.msk [vmem:[%s85] ss:$-30 sm:$0x7] %vm84, %v83
  %s87 = scalar_lea.vmem %s1, 168
  %88 = vst.msk [vmem:[%s87] ss:$-30 sm:$0x38] %vm84, %v83
  %s89 = scalar_lea.vmem %s1, 238
  %90 = vst.msk [vmem:[%s89] ss:$-30 sm:$0xc0] %vm84, %v83
  %v91 = vld.sshfl [vmem:[%s0] sm:$0xff pattern:$0x25147036]
  %92 = vrot.lane.b32.xlu0 %v91, 119
  %v93 = vpop.permute.xlu0 %92
  %vm94 = vcmask 7168
  %s95 = scalar_lea.vmem %s1, 69
  %96 = vst.msk [vmem:[%s95] ss:$-30 sm:$0x7] %vm94, %v93
  %s97 = scalar_lea.vmem %s1, 169
  %98 = vst.msk [vmem:[%s97] ss:$-30 sm:$0x38] %vm94, %v93
  %s99 = scalar_lea.vmem %s1, 239
  %100 = vst.msk [vmem:[%s99] ss:$-30 sm:$0xc0] %vm94, %v93

// kernel: mine2_forward.1
$region0: #{mine2_forward.1}
  #allocation0 [shape = 'u32[]', space=smem, size = 0x4, offset = 0x4, fixed_abs, tag = 'smem constant byte address 0x4 - core index']
  #allocation1 [shape = 'u32[72,128]{1,0:T(1,128)}', space=vmem, size = 0x9000, scoped, tag = 'internal scratch']
  %s0 = inlined_call_operand.vmem [shape: f32[16,128], index: 0, kind: input, shape index: {}]
  %s1 = inlined_call_operand.vmem [shape: f32[80,16], index: 1, kind: input, shape index: {}]
  %s2 = inlined_call_operand.vmem [shape: f32[80,1], index: 2, kind: input, shape index: {}]
  %s3 = inlined_call_operand.vmem [shape: f32[80,80], index: 3, kind: input, shape index: {}]
  %s4 = inlined_call_operand.vmem [shape: f32[80,1], index: 4, kind: input, shape index: {}]
  %s5 = inlined_call_operand.vmem [shape: f32[8,80], index: 5, kind: input, shape index: {}]
  %s6 = inlined_call_operand.vmem [shape: f32[8,1], index: 6, kind: input, shape index: {}]
  %s7 = inlined_call_operand.vmem [shape: f32[8,128], index: 7, kind: output, shape index: {}]
  %s8 = sld [smem:[#allocation0]]
  $region38: #{mine2_forward.1} parent=0
    _
  %s10 = ssub.s32 1, %s8
  %s11 = scalar_select 0, %s10, %s8
  // Predicated region
  $region2: #{mine2_forward.1} parent=0 // pred_check
    _
  $region3: #{mine2_forward.1} parent=0 // pred_check_branch
    %13 = sbr.rel (0) target = $region5
  $region4: #{mine2_forward.1} parent=0 // pred_region
    _
  $region5: #{mine2_forward.1} parent=0 // pred_fallthru
    _
  // Predicated region
  $region6: #{mine2_forward.1} parent=0 // pred_check
    _
  $region7: #{mine2_forward.1} parent=0 // pred_check_branch
    %15 = sbr.rel (0) target = $region9
  $region8: #{mine2_forward.1} parent=0 // pred_region
    _
  $region9: #{mine2_forward.1} parent=0 // pred_fallthru
    _
  // Predicated region
  $region10: #{mine2_forward.1} parent=0 // pred_check
    _
  $region11: #{mine2_forward.1} parent=0 // pred_check_branch
    %17 = sbr.rel (0) target = $region13
  $region12: #{mine2_forward.1} parent=0 // pred_region
    _
  $region13: #{mine2_forward.1} parent=0 // pred_fallthru
    _
  // Predicated region
  $region14: #{mine2_forward.1} parent=0 // pred_check
    _
  $region15: #{mine2_forward.1} parent=0 // pred_check_branch
    %19 = sbr.rel (0) target = $region17
  $region16: #{mine2_forward.1} parent=0 // pred_region
    _
  $region17: #{mine2_forward.1} parent=0 // pred_fallthru
    _
  // Predicated region
  $region18: #{mine2_forward.1} parent=0 // pred_check
    _
  $region19: #{mine2_forward.1} parent=0 // pred_check_branch
    %21 = sbr.rel (0) target = $region21
  $region20: #{mine2_forward.1} parent=0 // pred_region
    _
  $region21: #{mine2_forward.1} parent=0 // pred_fallthru
    _
  // Predicated region
  $region22: #{mine2_forward.1} parent=0 // pred_check
    _
  $region23: #{mine2_forward.1} parent=0 // pred_check_branch
    %23 = sbr.rel (0) target = $region25
  $region24: #{mine2_forward.1} parent=0 // pred_region
    _
  $region25: #{mine2_forward.1} parent=0 // pred_fallthru
    _
  // Predicated region
  $region26: #{mine2_forward.1} parent=0 // pred_check
    _
  $region27: #{mine2_forward.1} parent=0 // pred_check_branch
    %25 = sbr.rel (0) target = $region29
  $region28: #{mine2_forward.1} parent=0 // pred_region
    _
  $region29: #{mine2_forward.1} parent=0 // pred_fallthru
    _
  %v26 = vld [vmem:[%s1] sm:$0xff]
  %v27 = vld [vmem:[%s1 + $0x8] sm:$0xff]
  %v28 = vld [vmem:[%s1 + $0x10] sm:$0xff]
  %v29 = vld [vmem:[%s1 + $0x18] sm:$0xff]
  %v30 = vld [vmem:[%s1 + $0x20] sm:$0xff]
  %v31 = vld [vmem:[%s1 + $0x28] sm:$0xff]
  %v32 = vld [vmem:[%s1 + $0x30] sm:$0xff]
  %v33 = vld [vmem:[%s1 + $0x38] sm:$0xff]
  %v34 = vld [vmem:[%s1 + $0x40] sm:$0xff]
  %v35 = vld [vmem:[%s1 + $0x48] sm:$0xff]
  %v36 = vld [vmem:[%s2] sm:$0xff]
  %v37 = vld [vmem:[%s2 + $0x8] sm:$0xff]
  %v38 = vld [vmem:[%s2 + $0x10] sm:$0xff]
  %v39 = vld [vmem:[%s2 + $0x18] sm:$0xff]
  %v40 = vld [vmem:[%s2 + $0x20] sm:$0xff]
  %v41 = vld [vmem:[%s2 + $0x28] sm:$0xff]
  %v42 = vld [vmem:[%s2 + $0x30] sm:$0xff]
  %v43 = vld [vmem:[%s2 + $0x38] sm:$0xff]
  %v44 = vld [vmem:[%s2 + $0x40] sm:$0xff]
  %v45 = vld [vmem:[%s2 + $0x48] sm:$0xff]
  %v46 = vld [vmem:[%s3] sm:$0xff]
  %v47 = vld [vmem:[%s3 + $0x8] sm:$0xff]
  %v48 = vld [vmem:[%s3 + $0x10] sm:$0xff]
  %v49 = vld [vmem:[%s3 + $0x18] sm:$0xff]
  %v50 = vld [vmem:[%s3 + $0x20] sm:$0xff]
  %v51 = vld [vmem:[%s3 + $0x28] sm:$0xff]
  %v52 = vld [vmem:[%s3 + $0x30] sm:$0xff]
  %v53 = vld [vmem:[%s3 + $0x38] sm:$0xff]
  %v54 = vld [vmem:[%s3 + $0x40] sm:$0xff]
  %v55 = vld [vmem:[%s3 + $0x48] sm:$0xff]
  %v56 = vld [vmem:[%s4] sm:$0xff]
  %v57 = vld [vmem:[%s4 + $0x8] sm:$0xff]
  %v58 = vld [vmem:[%s4 + $0x10] sm:$0xff]
  %v59 = vld [vmem:[%s4 + $0x18] sm:$0xff]
  %v60 = vld [vmem:[%s4 + $0x20] sm:$0xff]
  %v61 = vld [vmem:[%s4 + $0x28] sm:$0xff]
  %v62 = vld [vmem:[%s4 + $0x30] sm:$0xff]
  %v63 = vld [vmem:[%s4 + $0x38] sm:$0xff]
  %v64 = vld [vmem:[%s4 + $0x40] sm:$0xff]
  %v65 = vld [vmem:[%s4 + $0x48] sm:$0xff]
  %v66 = vld [vmem:[%s5] sm:$0xff]
  %v67 = vld [vmem:[%s6] sm:$0xff]
  %v68 = vld [vmem:[%s0] sm:$0xff]
  %v69 = vld [vmem:[%s0 + $0x8] sm:$0xff]
  %71 = vset.pattern.permute.xlu0 0
  %72 = vperm.xlu0 %71, %v36
  %v73 = vpop.permute.xlu0 %72
  %76 = vset.pattern.permute.xlu0 0
  %77 = vperm.xlu0 %76, %v37
  %v78 = vpop.permute.xlu0 %77
  %81 = vset.pattern.permute.xlu0 0
  %82 = vperm.xlu0 %81, %v38
  %v83 = vpop.permute.xlu0 %82
  %86 = vset.pattern.permute.xlu0 0
  %87 = vperm.xlu0 %86, %v39
  %v88 = vpop.permute.xlu0 %87
  %91 = vset.pattern.permute.xlu0 0
  %92 = vperm.xlu0 %91, %v40
  %v93 = vpop.permute.xlu0 %92
  %96 = vset.pattern.permute.xlu0 0
  %97 = vperm.xlu0 %96, %v41
  %v98 = vpop.permute.xlu0 %97
  %101 = vset.pattern.permute.xlu0 0
  %102 = vperm.xlu0 %101, %v42
  %v103 = vpop.permute.xlu0 %102
  %106 = vset.pattern.permute.xlu0 0
  %107 = vperm.xlu0 %106, %v43
  %v108 = vpop.permute.xlu0 %107
  %111 = vset.pattern.permute.xlu0 0
  %112 = vperm.xlu0 %111, %v44
  %v113 = vpop.permute.xlu0 %112
  %116 = vset.pattern.permute.xlu0 0
  %117 = vperm.xlu0 %116, %v45
  %v118 = vpop.permute.xlu0 %117
  %vm120 = vcmask 130048
  %v122 = vsel %vm120, %v26, 0
  %v125 = vsel %vm120, %v27, 0
  %v128 = vsel %vm120, %v28, 0
  %v131 = vsel %vm120, %v29, 0
  %v134 = vsel %vm120, %v30, 0
  %v137 = vsel %vm120, %v31, 0
  %v140 = vsel %vm120, %v32, 0
  %v143 = vsel %vm120, %v33, 0
  %v146 = vsel %vm120, %v34, 0
  %v149 = vsel %vm120, %v35, 0
  %151 = vmatpush.msra.mxu0 0.0
  %152 = vmatpush.msra.mxu0 0.0
  %153 = vmatpush.msra.mxu0 0.0
  %154 = vmatpush.msra.mxu0 0.0
  %155 = vmatpush.msra.mxu0 0.0
  %156 = vmatpush.msra.mxu0 0.0
  %157 = vmatpush.msra.mxu0 0.0
  %158 = vmatpush.msra.mxu0 0.0
  %159 = vmatpush.msra.mxu0 0.0
  %160 = vmatpush.msra.mxu0 0.0
  %161 = vmatpush.msra.mxu0 0.0
  %162 = vmatpush.msra.mxu0 0.0
  %163 = vmatpush.msra.mxu0 0.0
  %164 = vmatpush.msra.mxu0 0.0
  %v165 = vand.u32 %v69, 4294901760
  %166 = vmatpush.msra.mxu0 %v165
  %v167 = vand.u32 %v68, 4294901760
  %168 = vmatpush.msra.mxu0 %v167
  %v169 = vand.u32 %v122, 4294901760
  %v170 = vsub.f32 %v122, %v169
  %v171 = vand.u32 %v170, 4294901760
  %v172 = vsub.f32 %v170, %v171
  %v173 = vand.u32 %v172, 4294901760
  %174 = vmatmul.f32.gmra.mxu0 %v173
  %v175 = vpop.f32.mrf.mxu0
  %v176 = vadd.f32 %v73, %v175
  %v177 = vand.u32 %v125, 4294901760
  %v178 = vsub.f32 %v125, %v177
  %v179 = vand.u32 %v178, 4294901760
  %v180 = vsub.f32 %v178, %v179
  %v181 = vand.u32 %v180, 4294901760
  %182 = vmatmul.f32.gmra.mxu0 %v181
  %v183 = vpop.f32.mrf.mxu0
  %v184 = vadd.f32 %v78, %v183
  %v185 = vand.u32 %v128, 4294901760
  %v186 = vsub.f32 %v128, %v185
  %v187 = vand.u32 %v186, 4294901760
  %v188 = vsub.f32 %v186, %v187
  %v189 = vand.u32 %v188, 4294901760
  %190 = vmatmul.f32.gmra.mxu0 %v189
  %v191 = vpop.f32.mrf.mxu0
  %v192 = vadd.f32 %v83, %v191
  %v193 = vand.u32 %v131, 4294901760
  %v194 = vsub.f32 %v131, %v193
  %v195 = vand.u32 %v194, 4294901760
  %v196 = vsub.f32 %v194, %v195
  %v197 = vand.u32 %v196, 4294901760
  %198 = vmatmul.f32.gmra.mxu0 %v197
  %v199 = vpop.f32.mrf.mxu0
  %v200 = vadd.f32 %v88, %v199
  %v201 = vand.u32 %v134, 4294901760
  %v202 = vsub.f32 %v134, %v201
  %v203 = vand.u32 %v202, 4294901760
  %v204 = vsub.f32 %v202, %v203
  %v205 = vand.u32 %v204, 4294901760
  %206 = vmatmul.f32.gmra.mxu0 %v205
  %v207 = vpop.f32.mrf.mxu0
  %v208 = vadd.f32 %v93, %v207
  %v209 = vand.u32 %v137, 4294901760
  %v210 = vsub.f32 %v137, %v209
  %v211 = vand.u32 %v210, 4294901760
  %v212 = vsub.f32 %v210, %v211
  %v213 = vand.u32 %v212, 4294901760
  %214 = vmatmul.f32.gmra.mxu0 %v213
  %v215 = vpop.f32.mrf.mxu0
  %v216 = vadd.f32 %v98, %v215
  %v217 = vand.u32 %v140, 4294901760
  %v218 = vsub.f32 %v140, %v217
  %v219 = vand.u32 %v218, 4294901760
  %v220 = vsub.f32 %v218, %v219
  %v221 = vand.u32 %v220, 4294901760
  %222 = vmatmul.f32.gmra.mxu0 %v221
  %v223 = vpop.f32.mrf.mxu0
  %v224 = vadd.f32 %v103, %v223
  %v225 = vand.u32 %v143, 4294901760
  %v226 = vsub.f32 %v143, %v225
  %v227 = vand.u32 %v226, 4294901760
  %v228 = vsub.f32 %v226, %v227
  %v229 = vand.u32 %v228, 4294901760
  %230 = vmatmul.f32.gmra.mxu0 %v229
  %v231 = vpop.f32.mrf.mxu0
  %v232 = vadd.f32 %v108, %v231
  %v233 = vand.u32 %v146, 4294901760
  %v234 = vsub.f32 %v146, %v233
  %v235 = vand.u32 %v234, 4294901760
  %v236 = vsub.f32 %v234, %v235
  %v237 = vand.u32 %v236, 4294901760
  %238 = vmatmul.f32.gmra.mxu0 %v237
  %v239 = vpop.f32.mrf.mxu0
  %v240 = vadd.f32 %v113, %v239
  %v241 = vand.u32 %v149, 4294901760
  %v242 = vsub.f32 %v149, %v241
  %v243 = vand.u32 %v242, 4294901760
  %v244 = vsub.f32 %v242, %v243
  %v245 = vand.u32 %v244, 4294901760
  %246 = vmatmul.f32.gmra.mxu0 %v245
  %v247 = vpop.f32.mrf.mxu0
  %v248 = vadd.f32 %v118, %v247
  %249 = vdwg.mxu0
  %250 = vmatpush.msra.mxu0 0.0
  %251 = vmatpush.msra.mxu0 0.0
  %252 = vmatpush.msra.mxu0 0.0
  %253 = vmatpush.msra.mxu0 0.0
  %254 = vmatpush.msra.mxu0 0.0
  %255 = vmatpush.msra.mxu0 0.0
  %256 = vmatpush.msra.mxu0 0.0
  %257 = vmatpush.msra.mxu0 0.0
  %258 = vmatpush.msra.mxu0 0.0
  %259 = vmatpush.msra.mxu0 0.0
  %260 = vmatpush.msra.mxu0 0.0
  %261 = vmatpush.msra.mxu0 0.0
  %262 = vmatpush.msra.mxu0 0.0
  %263 = vmatpush.msra.mxu0 0.0
  %v264 = vand.u32 %v69, 4294901760
  %v265 = vsub.f32 %v69, %v264
  %v266 = vand.u32 %v265, 4294901760
  %v267 = vsub.f32 %v265, %v266
  %v268 = vand.u32 %v267, 4294901760
  %269 = vmatpush.msra.mxu0 %v268
  %v270 = vand.u32 %v68, 4294901760
  %v271 = vsub.f32 %v68, %v270
  %v272 = vand.u32 %v271, 4294901760
  %v273 = vsub.f32 %v271, %v272
  %v274 = vand.u32 %v273, 4294901760
  %275 = vmatpush.msra.mxu0 %v274
  %v276 = vand.u32 %v122, 4294901760
  %277 = vmatmul.f32.gmra.mxu0 %v276
  %v278 = vpop.f32.mrf.mxu0
  %v279 = vadd.f32 %v176, %v278
  %v280 = vand.u32 %v125, 4294901760
  %281 = vmatmul.f32.gmra.mxu0 %v280
  %v282 = vpop.f32.mrf.mxu0
  %v283 = vadd.f32 %v184, %v282
  %v284 = vand.u32 %v128, 4294901760
  %285 = vmatmul.f32.gmra.mxu0 %v284
  %v286 = vpop.f32.mrf.mxu0
  %v287 = vadd.f32 %v192, %v286
  %v288 = vand.u32 %v131, 4294901760
  %289 = vmatmul.f32.gmra.mxu0 %v288
  %v290 = vpop.f32.mrf.mxu0
  %v291 = vadd.f32 %v200, %v290
  %v292 = vand.u32 %v134, 4294901760
  %293 = vmatmul.f32.gmra.mxu0 %v292
  %v294 = vpop.f32.mrf.mxu0
  %v295 = vadd.f32 %v208, %v294
  %v296 = vand.u32 %v137, 4294901760
  %297 = vmatmul.f32.gmra.mxu0 %v296
  %v298 = vpop.f32.mrf.mxu0
  %v299 = vadd.f32 %v216, %v298
  %v300 = vand.u32 %v140, 4294901760
  %301 = vmatmul.f32.gmra.mxu0 %v300
  %v302 = vpop.f32.mrf.mxu0
  %v303 = vadd.f32 %v224, %v302
  %v304 = vand.u32 %v143, 4294901760
  %305 = vmatmul.f32.gmra.mxu0 %v304
  %v306 = vpop.f32.mrf.mxu0
  %v307 = vadd.f32 %v232, %v306
  %v308 = vand.u32 %v146, 4294901760
  %309 = vmatmul.f32.gmra.mxu0 %v308
  %v310 = vpop.f32.mrf.mxu0
  %v311 = vadd.f32 %v240, %v310
  %v312 = vand.u32 %v149, 4294901760
  %313 = vmatmul.f32.gmra.mxu0 %v312
  %v314 = vpop.f32.mrf.mxu0
  %v315 = vadd.f32 %v248, %v314
  %316 = vdwg.mxu0
  %317 = vmatpush.msra.mxu0 0.0
  %318 = vmatpush.msra.mxu0 0.0
  %319 = vmatpush.msra.mxu0 0.0
  %320 = vmatpush.msra.mxu0 0.0
  %321 = vmatpush.msra.mxu0 0.0
  %322 = vmatpush.msra.mxu0 0.0
  %323 = vmatpush.msra.mxu0 0.0
  %324 = vmatpush.msra.mxu0 0.0
  %325 = vmatpush.msra.mxu0 0.0
  %326 = vmatpush.msra.mxu0 0.0
  %327 = vmatpush.msra.mxu0 0.0
  %328 = vmatpush.msra.mxu0 0.0
  %329 = vmatpush.msra.mxu0 0.0
  %330 = vmatpush.msra.mxu0 0.0
  %v331 = vand.u32 %v69, 4294901760
  %v332 = vsub.f32 %v69, %v331
  %333 = vmatpush.msra.mxu0 %v332
  %v334 = vand.u32 %v68, 4294901760
  %v335 = vsub.f32 %v68, %v334
  %336 = vmatpush.msra.mxu0 %v335
  %v337 = vand.u32 %v122, 4294901760
  %v338 = vsub.f32 %v122, %v337
  %339 = vmatmul.f32.gmra.mxu0 %v338
  %v340 = vpop.f32.mrf.mxu0
  %v341 = vadd.f32 %v279, %v340
  %v342 = vand.u32 %v125, 4294901760
  %v343 = vsub.f32 %v125, %v342
  %344 = vmatmul.f32.gmra.mxu0 %v343
  %v345 = vpop.f32.mrf.mxu0
  %v346 = vadd.f32 %v283, %v345
  %v347 = vand.u32 %v128, 4294901760
  %v348 = vsub.f32 %v128, %v347
  %349 = vmatmul.f32.gmra.mxu0 %v348
  %v350 = vpop.f32.mrf.mxu0
  %v351 = vadd.f32 %v287, %v350
  %v352 = vand.u32 %v131, 4294901760
  %v353 = vsub.f32 %v131, %v352
  %354 = vmatmul.f32.gmra.mxu0 %v353
  %v355 = vpop.f32.mrf.mxu0
  %v356 = vadd.f32 %v291, %v355
  %v357 = vand.u32 %v134, 4294901760
  %v358 = vsub.f32 %v134, %v357
  %359 = vmatmul.f32.gmra.mxu0 %v358
  %v360 = vpop.f32.mrf.mxu0
  %v361 = vadd.f32 %v295, %v360
  %v362 = vand.u32 %v137, 4294901760
  %v363 = vsub.f32 %v137, %v362
  %364 = vmatmul.f32.gmra.mxu0 %v363
  %v365 = vpop.f32.mrf.mxu0
  %v366 = vadd.f32 %v299, %v365
  %v367 = vand.u32 %v140, 4294901760
  %v368 = vsub.f32 %v140, %v367
  %369 = vmatmul.f32.gmra.mxu0 %v368
  %v370 = vpop.f32.mrf.mxu0
  %v371 = vadd.f32 %v303, %v370
  %v372 = vand.u32 %v143, 4294901760
  %v373 = vsub.f32 %v143, %v372
  %374 = vmatmul.f32.gmra.mxu0 %v373
  %v375 = vpop.f32.mrf.mxu0
  %v376 = vadd.f32 %v307, %v375
  %v377 = vand.u32 %v146, 4294901760
  %v378 = vsub.f32 %v146, %v377
  %379 = vmatmul.f32.gmra.mxu0 %v378
  %v380 = vpop.f32.mrf.mxu0
  %v381 = vadd.f32 %v311, %v380
  %v382 = vand.u32 %v149, 4294901760
  %v383 = vsub.f32 %v149, %v382
  %384 = vmatmul.f32.gmra.mxu0 %v383
  %v385 = vpop.f32.mrf.mxu0
  %v386 = vadd.f32 %v315, %v385
  %387 = vdwg.mxu0
  %388 = vmatpush.msra.mxu0 0.0
  %389 = vmatpush.msra.mxu0 0.0
  %390 = vmatpush.msra.mxu0 0.0
  %391 = vmatpush.msra.mxu0 0.0
  %392 = vmatpush.msra.mxu0 0.0
  %393 = vmatpush.msra.mxu0 0.0
  %394 = vmatpush.msra.mxu0 0.0
  %395 = vmatpush.msra.mxu0 0.0
  %396 = vmatpush.msra.mxu0 0.0
  %397 = vmatpush.msra.mxu0 0.0
  %398 = vmatpush.msra.mxu0 0.0
  %399 = vmatpush.msra.mxu0 0.0
  %400 = vmatpush.msra.mxu0 0.0
  %401 = vmatpush.msra.mxu0 0.0
  %v402 = vand.u32 %v69, 4294901760
  %403 = vmatpush.msra.mxu0 %v402
  %v404 = vand.u32 %v68, 4294901760
  %405 = vmatpush.msra.mxu0 %v404
  %v406 = vand.u32 %v122, 4294901760
  %v407 = vsub.f32 %v122, %v406
  %v408 = vand.u32 %v407, 4294901760
  %409 = vmatmul.f32.gmra.mxu0 %v408
  %v410 = vpop.f32.mrf.mxu0
  %v411 = vadd.f32 %v341, %v410
  %v412 = vand.u32 %v125, 4294901760
  %v413 = vsub.f32 %v125, %v412
  %v414 = vand.u32 %v413, 4294901760
  %415 = vmatmul.f32.gmra.mxu0 %v414
  %v416 = vpop.f32.mrf.mxu0
  %v417 = vadd.f32 %v346, %v416
  %v418 = vand.u32 %v128, 4294901760
  %v419 = vsub.f32 %v128, %v418
  %v420 = vand.u32 %v419, 4294901760
  %421 = vmatmul.f32.gmra.mxu0 %v420
  %v422 = vpop.f32.mrf.mxu0
  %v423 = vadd.f32 %v351, %v422
  %v424 = vand.u32 %v131, 4294901760
  %v425 = vsub.f32 %v131, %v424
  %v426 = vand.u32 %v425, 4294901760
  %427 = vmatmul.f32.gmra.mxu0 %v426
  %v428 = vpop.f32.mrf.mxu0
  %v429 = vadd.f32 %v356, %v428
  %v430 = vand.u32 %v134, 4294901760
  %v431 = vsub.f32 %v134, %v430
  %v432 = vand.u32 %v431, 4294901760
  %433 = vmatmul.f32.gmra.mxu0 %v432
  %v434 = vpop.f32.mrf.mxu0
  %v435 = vadd.f32 %v361, %v434
  %v436 = vand.u32 %v137, 4294901760
  %v437 = vsub.f32 %v137, %v436
  %v438 = vand.u32 %v437, 4294901760
  %439 = vmatmul.f32.gmra.mxu0 %v438
  %v440 = vpop.f32.mrf.mxu0
  %v441 = vadd.f32 %v366, %v440
  %v442 = vand.u32 %v140, 4294901760
  %v443 = vsub.f32 %v140, %v442
  %v444 = vand.u32 %v443, 4294901760
  %445 = vmatmul.f32.gmra.mxu0 %v444
  %v446 = vpop.f32.mrf.mxu0
  %v447 = vadd.f32 %v371, %v446
  %v448 = vand.u32 %v143, 4294901760
  %v449 = vsub.f32 %v143, %v448
  %v450 = vand.u32 %v449, 4294901760
  %451 = vmatmul.f32.gmra.mxu0 %v450
  %v452 = vpop.f32.mrf.mxu0
  %v453 = vadd.f32 %v376, %v452
  %v454 = vand.u32 %v146, 4294901760
  %v455 = vsub.f32 %v146, %v454
  %v456 = vand.u32 %v455, 4294901760
  %457 = vmatmul.f32.gmra.mxu0 %v456
  %v458 = vpop.f32.mrf.mxu0
  %v459 = vadd.f32 %v381, %v458
  %v460 = vand.u32 %v149, 4294901760
  %v461 = vsub.f32 %v149, %v460
  %v462 = vand.u32 %v461, 4294901760
  %463 = vmatmul.f32.gmra.mxu0 %v462
  %v464 = vpop.f32.mrf.mxu0
  %v465 = vadd.f32 %v386, %v464
  %466 = vdwg.mxu0
  %467 = vmatpush.msra.mxu0 0.0
  %468 = vmatpush.msra.mxu0 0.0
  %469 = vmatpush.msra.mxu0 0.0
  %470 = vmatpush.msra.mxu0 0.0
  %471 = vmatpush.msra.mxu0 0.0
  %472 = vmatpush.msra.mxu0 0.0
  %473 = vmatpush.msra.mxu0 0.0
  %474 = vmatpush.msra.mxu0 0.0
  %475 = vmatpush.msra.mxu0 0.0
  %476 = vmatpush.msra.mxu0 0.0
  %477 = vmatpush.msra.mxu0 0.0
  %478 = vmatpush.msra.mxu0 0.0
  %479 = vmatpush.msra.mxu0 0.0
  %480 = vmatpush.msra.mxu0 0.0
  %v481 = vand.u32 %v69, 4294901760
  %v482 = vsub.f32 %v69, %v481
  %v483 = vand.u32 %v482, 4294901760
  %484 = vmatpush.msra.mxu0 %v483
  %v485 = vand.u32 %v68, 4294901760
  %v486 = vsub.f32 %v68, %v485
  %v487 = vand.u32 %v486, 4294901760
  %488 = vmatpush.msra.mxu0 %v487
  %v489 = vand.u32 %v122, 4294901760
  %490 = vmatmul.f32.gmra.mxu0 %v489
  %v491 = vpop.f32.mrf.mxu0
  %v492 = vadd.f32 %v411, %v491
  %v493 = vand.u32 %v125, 4294901760
  %494 = vmatmul.f32.gmra.mxu0 %v493
  %v495 = vpop.f32.mrf.mxu0
  %v496 = vadd.f32 %v417, %v495
  %v497 = vand.u32 %v128, 4294901760
  %498 = vmatmul.f32.gmra.mxu0 %v497
  %v499 = vpop.f32.mrf.mxu0
  %v500 = vadd.f32 %v423, %v499
  %v501 = vand.u32 %v131, 4294901760
  %502 = vmatmul.f32.gmra.mxu0 %v501
  %v503 = vpop.f32.mrf.mxu0
  %v504 = vadd.f32 %v429, %v503
  %v505 = vand.u32 %v134, 4294901760
  %506 = vmatmul.f32.gmra.mxu0 %v505
  %v507 = vpop.f32.mrf.mxu0
  %v508 = vadd.f32 %v435, %v507
  %v509 = vand.u32 %v137, 4294901760
  %510 = vmatmul.f32.gmra.mxu0 %v509
  %v511 = vpop.f32.mrf.mxu0
  %v512 = vadd.f32 %v441, %v511
  %v513 = vand.u32 %v140, 4294901760
  %514 = vmatmul.f32.gmra.mxu0 %v513
  %v515 = vpop.f32.mrf.mxu0
  %v516 = vadd.f32 %v447, %v515
  %v517 = vand.u32 %v143, 4294901760
  %518 = vmatmul.f32.gmra.mxu0 %v517
  %v519 = vpop.f32.mrf.mxu0
  %v520 = vadd.f32 %v453, %v519
  %v521 = vand.u32 %v146, 4294901760
  %522 = vmatmul.f32.gmra.mxu0 %v521
  %v523 = vpop.f32.mrf.mxu0
  %v524 = vadd.f32 %v459, %v523
  %v525 = vand.u32 %v149, 4294901760
  %526 = vmatmul.f32.gmra.mxu0 %v525
  %v527 = vpop.f32.mrf.mxu0
  %v528 = vadd.f32 %v465, %v527
  %529 = vdwg.mxu0
  %530 = vmatpush.msra.mxu0 0.0
  %531 = vmatpush.msra.mxu0 0.0
  %532 = vmatpush.msra.mxu0 0.0
  %533 = vmatpush.msra.mxu0 0.0
  %534 = vmatpush.msra.mxu0 0.0
  %535 = vmatpush.msra.mxu0 0.0
  %536 = vmatpush.msra.mxu0 0.0
  %537 = vmatpush.msra.mxu0 0.0
  %538 = vmatpush.msra.mxu0 0.0
  %539 = vmatpush.msra.mxu0 0.0
  %540 = vmatpush.msra.mxu0 0.0
  %541 = vmatpush.msra.mxu0 0.0
  %542 = vmatpush.msra.mxu0 0.0
  %543 = vmatpush.msra.mxu0 0.0
  %v544 = vand.u32 %v69, 4294901760
  %545 = vmatpush.msra.mxu0 %v544
  %v546 = vand.u32 %v68, 4294901760
  %547 = vmatpush.msra.mxu0 %v546
  %v548 = vand.u32 %v122, 4294901760
  %549 = vmatmul.f32.gmra.mxu0 %v548
  %v550 = vpop.f32.mrf.mxu0
  %v551 = vadd.f32 %v492, %v550
  %v552 = vand.u32 %v125, 4294901760
  %553 = vmatmul.f32.gmra.mxu0 %v552
  %v554 = vpop.f32.mrf.mxu0
  %v555 = vadd.f32 %v496, %v554
  %v556 = vand.u32 %v128, 4294901760
  %557 = vmatmul.f32.gmra.mxu0 %v556
  %v558 = vpop.f32.mrf.mxu0
  %v559 = vadd.f32 %v500, %v558
  %v560 = vand.u32 %v131, 4294901760
  %561 = vmatmul.f32.gmra.mxu0 %v560
  %v562 = vpop.f32.mrf.mxu0
  %v563 = vadd.f32 %v504, %v562
  %v564 = vand.u32 %v134, 4294901760
  %565 = vmatmul.f32.gmra.mxu0 %v564
  %v566 = vpop.f32.mrf.mxu0
  %v567 = vadd.f32 %v508, %v566
  %v568 = vand.u32 %v137, 4294901760
  %569 = vmatmul.f32.gmra.mxu0 %v568
  %v570 = vpop.f32.mrf.mxu0
  %v571 = vadd.f32 %v512, %v570
  %v572 = vand.u32 %v140, 4294901760
  %573 = vmatmul.f32.gmra.mxu0 %v572
  %v574 = vpop.f32.mrf.mxu0
  %v575 = vadd.f32 %v516, %v574
  %v576 = vand.u32 %v143, 4294901760
  %577 = vmatmul.f32.gmra.mxu0 %v576
  %v578 = vpop.f32.mrf.mxu0
  %v579 = vadd.f32 %v520, %v578
  %v580 = vand.u32 %v146, 4294901760
  %581 = vmatmul.f32.gmra.mxu0 %v580
  %v582 = vpop.f32.mrf.mxu0
  %v583 = vadd.f32 %v524, %v582
  %v584 = vand.u32 %v149, 4294901760
  %585 = vmatmul.f32.gmra.mxu0 %v584
  %v586 = vpop.f32.mrf.mxu0
  %v587 = vadd.f32 %v528, %v586
  %588 = vdwg.mxu0
  %v589 = vmax.f32 %v551, 0.0
  %v590 = vmax.f32 %v555, 0.0
  %v591 = vmax.f32 %v559, 0.0
  %v592 = vmax.f32 %v563, 0.0
  %v593 = vmax.f32 %v567, 0.0
  %v594 = vmax.f32 %v571, 0.0
  %v595 = vmax.f32 %v575, 0.0
  %v596 = vmax.f32 %v579, 0.0
  %v597 = vmax.f32 %v583, 0.0
  %v598 = vmax.f32 %v587, 0.0
  %600 = vset.pattern.permute.xlu0 0
  %601 = vperm.xlu0 %600, %v56
  %v602 = vpop.permute.xlu0 %601
  %605 = vset.pattern.permute.xlu0 0
  %606 = vperm.xlu0 %605, %v57
  %v607 = vpop.permute.xlu0 %606
  %610 = vset.pattern.permute.xlu0 0
  %611 = vperm.xlu0 %610, %v58
  %v612 = vpop.permute.xlu0 %611
  %615 = vset.pattern.permute.xlu0 0
  %616 = vperm.xlu0 %615, %v59
  %v617 = vpop.permute.xlu0 %616
  %620 = vset.pattern.permute.xlu0 0
  %621 = vperm.xlu0 %620, %v60
  %v622 = vpop.permute.xlu0 %621
  %625 = vset.pattern.permute.xlu0 0
  %626 = vperm.xlu0 %625, %v61
  %v627 = vpop.permute.xlu0 %626
  %630 = vset.pattern.permute.xlu0 0
  %631 = vperm.xlu0 %630, %v62
  %v632 = vpop.permute.xlu0 %631
  %635 = vset.pattern.permute.xlu0 0
  %636 = vperm.xlu0 %635, %v63
  %v637 = vpop.permute.xlu0 %636
  %640 = vset.pattern.permute.xlu0 0
  %641 = vperm.xlu0 %640, %v64
  %v642 = vpop.permute.xlu0 %641
  %645 = vset.pattern.permute.xlu0 0
  %646 = vperm.xlu0 %645, %v65
  %v647 = vpop.permute.xlu0 %646
  %vm649 = vcmask 654336
  %v651 = vsel %vm649, %v46, 0
  %v654 = vsel %vm649, %v47, 0
  %v657 = vsel %vm649, %v48, 0
  %v660 = vsel %vm649, %v49, 0
  %v663 = vsel %vm649, %v50, 0
  %v666 = vsel %vm649, %v51, 0
  %v669 = vsel %vm649, %v52, 0
  %v672 = vsel %vm649, %v53, 0
  %v675 = vsel %vm649, %v54, 0
  %v678 = vsel %vm649, %v55, 0
  %680 = vmatpush.msra.mxu0 0.0
  %681 = vmatpush.msra.mxu0 0.0
  %682 = vmatpush.msra.mxu0 0.0
  %683 = vmatpush.msra.mxu0 0.0
  %684 = vmatpush.msra.mxu0 0.0
  %685 = vmatpush.msra.mxu0 0.0
  %v686 = vand.u32 %v598, 4294901760
  %687 = vmatpush.msra.mxu0 %v686
  %v688 = vand.u32 %v597, 4294901760
  %689 = vmatpush.msra.mxu0 %v688
  %v690 = vand.u32 %v596, 4294901760
  %691 = vmatpush.msra.mxu0 %v690
  %v692 = vand.u32 %v595, 4294901760
  %693 = vmatpush.msra.mxu0 %v692
  %v694 = vand.u32 %v594, 4294901760
  %695 = vmatpush.msra.mxu0 %v694
  %v696 = vand.u32 %v593, 4294901760
  %697 = vmatpush.msra.mxu0 %v696
  %v698 = vand.u32 %v592, 4294901760
  %699 = vmatpush.msra.mxu0 %v698
  %v700 = vand.u32 %v591, 4294901760
  %701 = vmatpush.msra.mxu0 %v700
  %v702 = vand.u32 %v590, 4294901760
  %703 = vmatpush.msra.mxu0 %v702
  %v704 = vand.u32 %v589, 4294901760
  %705 = vmatpush.msra.mxu0 %v704
  %v706 = vand.u32 %v651, 4294901760
  %v707 = vsub.f32 %v651, %v706
  %v708 = vand.u32 %v707, 4294901760
  %v709 = vsub.f32 %v707, %v708
  %v710 = vand.u32 %v709, 4294901760
  %711 = vmatmul.f32.gmra.mxu0 %v710
  %v712 = vpop.f32.mrf.mxu0
  %v713 = vadd.f32 %v602, %v712
  %v714 = vand.u32 %v654, 4294901760
  %v715 = vsub.f32 %v654, %v714
  %v716 = vand.u32 %v715, 4294901760
  %v717 = vsub.f32 %v715, %v716
  %v718 = vand.u32 %v717, 4294901760
  %719 = vmatmul.f32.gmra.mxu0 %v718
  %v720 = vpop.f32.mrf.mxu0
  %v721 = vadd.f32 %v607, %v720
  %v722 = vand.u32 %v657, 4294901760
  %v723 = vsub.f32 %v657, %v722
  %v724 = vand.u32 %v723, 4294901760
  %v725 = vsub.f32 %v723, %v724
  %v726 = vand.u32 %v725, 4294901760
  %727 = vmatmul.f32.gmra.mxu0 %v726
  %v728 = vpop.f32.mrf.mxu0
  %v729 = vadd.f32 %v612, %v728
  %v730 = vand.u32 %v660, 4294901760
  %v731 = vsub.f32 %v660, %v730
  %v732 = vand.u32 %v731, 4294901760
  %v733 = vsub.f32 %v731, %v732
  %v734 = vand.u32 %v733, 4294901760
  %735 = vmatmul.f32.gmra.mxu0 %v734
  %v736 = vpop.f32.mrf.mxu0
  %v737 = vadd.f32 %v617, %v736
  %v738 = vand.u32 %v663, 4294901760
  %v739 = vsub.f32 %v663, %v738
  %v740 = vand.u32 %v739, 4294901760
  %v741 = vsub.f32 %v739, %v740
  %v742 = vand.u32 %v741, 4294901760
  %743 = vmatmul.f32.gmra.mxu0 %v742
  %v744 = vpop.f32.mrf.mxu0
  %v745 = vadd.f32 %v622, %v744
  %v746 = vand.u32 %v666, 4294901760
  %v747 = vsub.f32 %v666, %v746
  %v748 = vand.u32 %v747, 4294901760
  %v749 = vsub.f32 %v747, %v748
  %v750 = vand.u32 %v749, 4294901760
  %751 = vmatmul.f32.gmra.mxu0 %v750
  %v752 = vpop.f32.mrf.mxu0
  %v753 = vadd.f32 %v627, %v752
  %v754 = vand.u32 %v669, 4294901760
  %v755 = vsub.f32 %v669, %v754
  %v756 = vand.u32 %v755, 4294901760
  %v757 = vsub.f32 %v755, %v756
  %v758 = vand.u32 %v757, 4294901760
  %759 = vmatmul.f32.gmra.mxu0 %v758
  %v760 = vpop.f32.mrf.mxu0
  %v761 = vadd.f32 %v632, %v760
  %v762 = vand.u32 %v672, 4294901760
  %v763 = vsub.f32 %v672, %v762
  %v764 = vand.u32 %v763, 4294901760
  %v765 = vsub.f32 %v763, %v764
  %v766 = vand.u32 %v765, 4294901760
  %767 = vmatmul.f32.gmra.mxu0 %v766
  %v768 = vpop.f32.mrf.mxu0
  %v769 = vadd.f32 %v637, %v768
  %v770 = vand.u32 %v675, 4294901760
  %v771 = vsub.f32 %v675, %v770
  %v772 = vand.u32 %v771, 4294901760
  %v773 = vsub.f32 %v771, %v772
  %v774 = vand.u32 %v773, 4294901760
  %775 = vmatmul.f32.gmra.mxu0 %v774
  %v776 = vpop.f32.mrf.mxu0
  %v777 = vadd.f32 %v642, %v776
  %v778 = vand.u32 %v678, 4294901760
  %v779 = vsub.f32 %v678, %v778
  %v780 = vand.u32 %v779, 4294901760
  %v781 = vsub.f32 %v779, %v780
  %v782 = vand.u32 %v781, 4294901760
  %783 = vmatmul.f32.gmra.mxu0 %v782
  %v784 = vpop.f32.mrf.mxu0
  %v785 = vadd.f32 %v647, %v784
  %786 = vdwg.mxu0
  %787 = vmatpush.msra.mxu0 0.0
  %788 = vmatpush.msra.mxu0 0.0
  %789 = vmatpush.msra.mxu0 0.0
  %790 = vmatpush.msra.mxu0 0.0
  %791 = vmatpush.msra.mxu0 0.0
  %792 = vmatpush.msra.mxu0 0.0
  %v793 = vand.u32 %v598, 4294901760
  %v794 = vsub.f32 %v598, %v793
  %v795 = vand.u32 %v794, 4294901760
  %v796 = vsub.f32 %v794, %v795
  %v797 = vand.u32 %v796, 4294901760
  %798 = vmatpush.msra.mxu0 %v797
  %v799 = vand.u32 %v597, 4294901760
  %v800 = vsub.f32 %v597, %v799
  %v801 = vand.u32 %v800, 4294901760
  %v802 = vsub.f32 %v800, %v801
  %v803 = vand.u32 %v802, 4294901760
  %804 = vmatpush.msra.mxu0 %v803
  %v805 = vand.u32 %v596, 4294901760
  %v806 = vsub.f32 %v596, %v805
  %v807 = vand.u32 %v806, 4294901760
  %v808 = vsub.f32 %v806, %v807
  %v809 = vand.u32 %v808, 4294901760
  %810 = vmatpush.msra.mxu0 %v809
  %v811 = vand.u32 %v595, 4294901760
  %v812 = vsub.f32 %v595, %v811
  %v813 = vand.u32 %v812, 4294901760
  %v814 = vsub.f32 %v812, %v813
  %v815 = vand.u32 %v814, 4294901760
  %816 = vmatpush.msra.mxu0 %v815
  %v817 = vand.u32 %v594, 4294901760
  %v818 = vsub.f32 %v594, %v817
  %v819 = vand.u32 %v818, 4294901760
  %v820 = vsub.f32 %v818, %v819
  %v821 = vand.u32 %v820, 4294901760
  %822 = vmatpush.msra.mxu0 %v821
  %v823 = vand.u32 %v593, 4294901760
  %v824 = vsub.f32 %v593, %v823
  %v825 = vand.u32 %v824, 4294901760
  %v826 = vsub.f32 %v824, %v825
  %v827 = vand.u32 %v826, 4294901760
  %828 = vmatpush.msra.mxu0 %v827
  %v829 = vand.u32 %v592, 4294901760
  %v830 = vsub.f32 %v592, %v829
  %v831 = vand.u32 %v830, 4294901760
  %v832 = vsub.f32 %v830, %v831
  %v833 = vand.u32 %v832, 4294901760
  %834 = vmatpush.msra.mxu0 %v833
  %v835 = vand.u32 %v591, 4294901760
  %v836 = vsub.f32 %v591, %v835
  %v837 = vand.u32 %v836, 4294901760
  %v838 = vsub.f32 %v836, %v837
  %v839 = vand.u32 %v838, 4294901760
  %840 = vmatpush.msra.mxu0 %v839
  %v841 = vand.u32 %v590, 4294901760
  %v842 = vsub.f32 %v590, %v841
  %v843 = vand.u32 %v842, 4294901760
  %v844 = vsub.f32 %v842, %v843
  %v845 = vand.u32 %v844, 4294901760
  %846 = vmatpush.msra.mxu0 %v845
  %v847 = vand.u32 %v589, 4294901760
  %v848 = vsub.f32 %v589, %v847
  %v849 = vand.u32 %v848, 4294901760
  %v850 = vsub.f32 %v848, %v849
  %v851 = vand.u32 %v850, 4294901760
  %852 = vmatpush.msra.mxu0 %v851
  %v853 = vand.u32 %v651, 4294901760
  %854 = vmatmul.f32.gmra.mxu0 %v853
  %v855 = vpop.f32.mrf.mxu0
  %v856 = vadd.f32 %v713, %v855
  %v857 = vand.u32 %v654, 4294901760
  %858 = vmatmul.f32.gmra.mxu0 %v857
  %v859 = vpop.f32.mrf.mxu0
  %v860 = vadd.f32 %v721, %v859
  %v861 = vand.u32 %v657, 4294901760
  %862 = vmatmul.f32.gmra.mxu0 %v861
  %v863 = vpop.f32.mrf.mxu0
  %v864 = vadd.f32 %v729, %v863
  %v865 = vand.u32 %v660, 4294901760
  %866 = vmatmul.f32.gmra.mxu0 %v865
  %v867 = vpop.f32.mrf.mxu0
  %v868 = vadd.f32 %v737, %v867
  %v869 = vand.u32 %v663, 4294901760
  %870 = vmatmul.f32.gmra.mxu0 %v869
  %v871 = vpop.f32.mrf.mxu0
  %v872 = vadd.f32 %v745, %v871
  %v873 = vand.u32 %v666, 4294901760
  %874 = vmatmul.f32.gmra.mxu0 %v873
  %v875 = vpop.f32.mrf.mxu0
  %v876 = vadd.f32 %v753, %v875
  %v877 = vand.u32 %v669, 4294901760
  %878 = vmatmul.f32.gmra.mxu0 %v877
  %v879 = vpop.f32.mrf.mxu0
  %v880 = vadd.f32 %v761, %v879
  %v881 = vand.u32 %v672, 4294901760
  %882 = vmatmul.f32.gmra.mxu0 %v881
  %v883 = vpop.f32.mrf.mxu0
  %v884 = vadd.f32 %v769, %v883
  %v885 = vand.u32 %v675, 4294901760
  %886 = vmatmul.f32.gmra.mxu0 %v885
  %v887 = vpop.f32.mrf.mxu0
  %v888 = vadd.f32 %v777, %v887
  %v889 = vand.u32 %v678, 4294901760
  %890 = vmatmul.f32.gmra.mxu0 %v889
  %v891 = vpop.f32.mrf.mxu0
  %v892 = vadd.f32 %v785, %v891
  %893 = vdwg.mxu0
  %894 = vmatpush.msra.mxu0 0.0
  %895 = vmatpush.msra.mxu0 0.0
  %896 = vmatpush.msra.mxu0 0.0
  %897 = vmatpush.msra.mxu0 0.0
  %898 = vmatpush.msra.mxu0 0.0
  %899 = vmatpush.msra.mxu0 0.0
  %v900 = vand.u32 %v598, 4294901760
  %v901 = vsub.f32 %v598, %v900
  %902 = vmatpush.msra.mxu0 %v901
  %v903 = vand.u32 %v597, 4294901760
  %v904 = vsub.f32 %v597, %v903
  %905 = vmatpush.msra.mxu0 %v904
  %v906 = vand.u32 %v596, 4294901760
  %v907 = vsub.f32 %v596, %v906
  %908 = vmatpush.msra.mxu0 %v907
  %v909 = vand.u32 %v595, 4294901760
  %v910 = vsub.f32 %v595, %v909
  %911 = vmatpush.msra.mxu0 %v910
  %v912 = vand.u32 %v594, 4294901760
  %v913 = vsub.f32 %v594, %v912
  %914 = vmatpush.msra.mxu0 %v913
  %v915 = vand.u32 %v593, 4294901760
  %v916 = vsub.f32 %v593, %v915
  %917 = vmatpush.msra.mxu0 %v916
  %v918 = vand.u32 %v592, 4294901760
  %v919 = vsub.f32 %v592, %v918
  %920 = vmatpush.msra.mxu0 %v919
  %v921 = vand.u32 %v591, 4294901760
  %v922 = vsub.f32 %v591, %v921
  %923 = vmatpush.msra.mxu0 %v922
  %v924 = vand.u32 %v590, 4294901760
  %v925 = vsub.f32 %v590, %v924
  %926 = vmatpush.msra.mxu0 %v925
  %v927 = vand.u32 %v589, 4294901760
  %v928 = vsub.f32 %v589, %v927
  %929 = vmatpush.msra.mxu0 %v928
  %v930 = vand.u32 %v651, 4294901760
  %v931 = vsub.f32 %v651, %v930
  %932 = vmatmul.f32.gmra.mxu0 %v931
  %v933 = vpop.f32.mrf.mxu0
  %v934 = vadd.f32 %v856, %v933
  %v935 = vand.u32 %v654, 4294901760
  %v936 = vsub.f32 %v654, %v935
  %937 = vmatmul.f32.gmra.mxu0 %v936
  %v938 = vpop.f32.mrf.mxu0
  %v939 = vadd.f32 %v860, %v938
  %v940 = vand.u32 %v657, 4294901760
  %v941 = vsub.f32 %v657, %v940
  %942 = vmatmul.f32.gmra.mxu0 %v941
  %v943 = vpop.f32.mrf.mxu0
  %v944 = vadd.f32 %v864, %v943
  %v945 = vand.u32 %v660, 4294901760
  %v946 = vsub.f32 %v660, %v945
  %947 = vmatmul.f32.gmra.mxu0 %v946
  %v948 = vpop.f32.mrf.mxu0
  %v949 = vadd.f32 %v868, %v948
  %v950 = vand.u32 %v663, 4294901760
  %v951 = vsub.f32 %v663, %v950
  %952 = vmatmul.f32.gmra.mxu0 %v951
  %v953 = vpop.f32.mrf.mxu0
  %v954 = vadd.f32 %v872, %v953
  %v955 = vand.u32 %v666, 4294901760
  %v956 = vsub.f32 %v666, %v955
  %957 = vmatmul.f32.gmra.mxu0 %v956
  %v958 = vpop.f32.mrf.mxu0
  %v959 = vadd.f32 %v876, %v958
  %v960 = vand.u32 %v669, 4294901760
  %v961 = vsub.f32 %v669, %v960
  %962 = vmatmul.f32.gmra.mxu0 %v961
  %v963 = vpop.f32.mrf.mxu0
  %v964 = vadd.f32 %v880, %v963
  %v965 = vand.u32 %v672, 4294901760
  %v966 = vsub.f32 %v672, %v965
  %967 = vmatmul.f32.gmra.mxu0 %v966
  %v968 = vpop.f32.mrf.mxu0
  %v969 = vadd.f32 %v884, %v968
  %v970 = vand.u32 %v675, 4294901760
  %v971 = vsub.f32 %v675, %v970
  %972 = vmatmul.f32.gmra.mxu0 %v971
  %v973 = vpop.f32.mrf.mxu0
  %v974 = vadd.f32 %v888, %v973
  %v975 = vand.u32 %v678, 4294901760
  %v976 = vsub.f32 %v678, %v975
  %977 = vmatmul.f32.gmra.mxu0 %v976
  %v978 = vpop.f32.mrf.mxu0
  %v979 = vadd.f32 %v892, %v978
  %980 = vdwg.mxu0
  %981 = vmatpush.msra.mxu0 0.0
  %982 = vmatpush.msra.mxu0 0.0
  %983 = vmatpush.msra.mxu0 0.0
  %984 = vmatpush.msra.mxu0 0.0
  %985 = vmatpush.msra.mxu0 0.0
  %986 = vmatpush.msra.mxu0 0.0
  %v987 = vand.u32 %v598, 4294901760
  %988 = vmatpush.msra.mxu0 %v987
  %v989 = vand.u32 %v597, 4294901760
  %990 = vmatpush.msra.mxu0 %v989
  %v991 = vand.u32 %v596, 4294901760
  %992 = vmatpush.msra.mxu0 %v991
  %v993 = vand.u32 %v595, 4294901760
  %994 = vmatpush.msra.mxu0 %v993
  %v995 = vand.u32 %v594, 4294901760
  %996 = vmatpush.msra.mxu0 %v995
  %v997 = vand.u32 %v593, 4294901760
  %998 = vmatpush.msra.mxu0 %v997
  %v999 = vand.u32 %v592, 4294901760
  %1000 = vmatpush.msra.mxu0 %v999
  %v1001 = vand.u32 %v591, 4294901760
  %1002 = vmatpush.msra.mxu0 %v1001
  %v1003 = vand.u32 %v590, 4294901760
  %1004 = vmatpush.msra.mxu0 %v1003
  %v1005 = vand.u32 %v589, 4294901760
  %1006 = vmatpush.msra.mxu0 %v1005
  %v1007 = vand.u32 %v651, 4294901760
  %v1008 = vsub.f32 %v651, %v1007
  %v1009 = vand.u32 %v1008, 4294901760
  %1010 = vmatmul.f32.gmra.mxu0 %v1009
  %v1011 = vpop.f32.mrf.mxu0
  %v1012 = vadd.f32 %v934, %v1011
  %v1013 = vand.u32 %v654, 4294901760
  %v1014 = vsub.f32 %v654, %v1013
  %v1015 = vand.u32 %v1014, 4294901760
  %1016 = vmatmul.f32.gmra.mxu0 %v1015
  %v1017 = vpop.f32.mrf.mxu0
  %v1018 = vadd.f32 %v939, %v1017
  %v1019 = vand.u32 %v657, 4294901760
  %v1020 = vsub.f32 %v657, %v1019
  %v1021 = vand.u32 %v1020, 4294901760
  %1022 = vmatmul.f32.gmra.mxu0 %v1021
  %v1023 = vpop.f32.mrf.mxu0
  %v1024 = vadd.f32 %v944, %v1023
  %v1025 = vand.u32 %v660, 4294901760
  %v1026 = vsub.f32 %v660, %v1025
  %v1027 = vand.u32 %v1026, 4294901760
  %1028 = vmatmul.f32.gmra.mxu0 %v1027
  %v1029 = vpop.f32.mrf.mxu0
  %v1030 = vadd.f32 %v949, %v1029
  %v1031 = vand.u32 %v663, 4294901760
  %v1032 = vsub.f32 %v663, %v1031
  %v1033 = vand.u32 %v1032, 4294901760
  %1034 = vmatmul.f32.gmra.mxu0 %v1033
  %v1035 = vpop.f32.mrf.mxu0
  %v1036 = vadd.f32 %v954, %v1035
  %v1037 = vand.u32 %v666, 4294901760
  %v1038 = vsub.f32 %v666, %v1037
  %v1039 = vand.u32 %v1038, 4294901760
  %1040 = vmatmul.f32.gmra.mxu0 %v1039
  %v1041 = vpop.f32.mrf.mxu0
  %v1042 = vadd.f32 %v959, %v1041
  %v1043 = vand.u32 %v669, 4294901760
  %v1044 = vsub.f32 %v669, %v1043
  %v1045 = vand.u32 %v1044, 4294901760
  %1046 = vmatmul.f32.gmra.mxu0 %v1045
  %v1047 = vpop.f32.mrf.mxu0
  %v1048 = vadd.f32 %v964, %v1047
  %v1049 = vand.u32 %v672, 4294901760
  %v1050 = vsub.f32 %v672, %v1049
  %v1051 = vand.u32 %v1050, 4294901760
  %1052 = vmatmul.f32.gmra.mxu0 %v1051
  %v1053 = vpop.f32.mrf.mxu0
  %v1054 = vadd.f32 %v969, %v1053
  %v1055 = vand.u32 %v675, 4294901760
  %v1056 = vsub.f32 %v675, %v1055
  %v1057 = vand.u32 %v1056, 4294901760
  %1058 = vmatmul.f32.gmra.mxu0 %v1057
  %v1059 = vpop.f32.mrf.mxu0
  %v1060 = vadd.f32 %v974, %v1059
  %v1061 = vand.u32 %v678, 4294901760
  %v1062 = vsub.f32 %v678, %v1061
  %v1063 = vand.u32 %v1062, 4294901760
  %1064 = vmatmul.f32.gmra.mxu0 %v1063
  %v1065 = vpop.f32.mrf.mxu0
  %v1066 = vadd.f32 %v979, %v1065
  %1067 = vdwg.mxu0
  %1068 = vmatpush.msra.mxu0 0.0
  %1069 = vmatpush.msra.mxu0 0.0
  %1070 = vmatpush.msra.mxu0 0.0
  %1071 = vmatpush.msra.mxu0 0.0
  %1072 = vmatpush.msra.mxu0 0.0
  %1073 = vmatpush.msra.mxu0 0.0
  %v1074 = vand.u32 %v598, 4294901760
  %v1075 = vsub.f32 %v598, %v1074
  %v1076 = vand.u32 %v1075, 4294901760
  %1077 = vmatpush.msra.mxu0 %v1076
  %v1078 = vand.u32 %v597, 4294901760
  %v1079 = vsub.f32 %v597, %v1078
  %v1080 = vand.u32 %v1079, 4294901760
  %1081 = vmatpush.msra.mxu0 %v1080
  %v1082 = vand.u32 %v596, 4294901760
  %v1083 = vsub.f32 %v596, %v1082
  %v1084 = vand.u32 %v1083, 4294901760
  %1085 = vmatpush.msra.mxu0 %v1084
  %v1086 = vand.u32 %v595, 4294901760
  %v1087 = vsub.f32 %v595, %v1086
  %v1088 = vand.u32 %v1087, 4294901760
  %1089 = vmatpush.msra.mxu0 %v1088
  %v1090 = vand.u32 %v594, 4294901760
  %v1091 = vsub.f32 %v594, %v1090
  %v1092 = vand.u32 %v1091, 4294901760
  %1093 = vmatpush.msra.mxu0 %v1092
  %v1094 = vand.u32 %v593, 4294901760
  %v1095 = vsub.f32 %v593, %v1094
  %v1096 = vand.u32 %v1095, 4294901760
  %1097 = vmatpush.msra.mxu0 %v1096
  %v1098 = vand.u32 %v592, 4294901760
  %v1099 = vsub.f32 %v592, %v1098
  %v1100 = vand.u32 %v1099, 4294901760
  %1101 = vmatpush.msra.mxu0 %v1100
  %v1102 = vand.u32 %v591, 4294901760
  %v1103 = vsub.f32 %v591, %v1102
  %v1104 = vand.u32 %v1103, 4294901760
  %1105 = vmatpush.msra.mxu0 %v1104
  %v1106 = vand.u32 %v590, 4294901760
  %v1107 = vsub.f32 %v590, %v1106
  %v1108 = vand.u32 %v1107, 4294901760
  %1109 = vmatpush.msra.mxu0 %v1108
  %v1110 = vand.u32 %v589, 4294901760
  %v1111 = vsub.f32 %v589, %v1110
  %v1112 = vand.u32 %v1111, 4294901760
  %1113 = vmatpush.msra.mxu0 %v1112
  %v1114 = vand.u32 %v651, 4294901760
  %1115 = vmatmul.f32.gmra.mxu0 %v1114
  %v1116 = vpop.f32.mrf.mxu0
  %v1117 = vadd.f32 %v1012, %v1116
  %v1118 = vand.u32 %v654, 4294901760
  %1119 = vmatmul.f32.gmra.mxu0 %v1118
  %v1120 = vpop.f32.mrf.mxu0
  %v1121 = vadd.f32 %v1018, %v1120
  %v1122 = vand.u32 %v657, 4294901760
  %1123 = vmatmul.f32.gmra.mxu0 %v1122
  %v1124 = vpop.f32.mrf.mxu0
  %v1125 = vadd.f32 %v1024, %v1124
  %v1126 = vand.u32 %v660, 4294901760
  %1127 = vmatmul.f32.gmra.mxu0 %v1126
  %v1128 = vpop.f32.mrf.mxu0
  %v1129 = vadd.f32 %v1030, %v1128
  %v1130 = vand.u32 %v663, 4294901760
  %1131 = vmatmul.f32.gmra.mxu0 %v1130
  %v1132 = vpop.f32.mrf.mxu0
  %v1133 = vadd.f32 %v1036, %v1132
  %v1134 = vand.u32 %v666, 4294901760
  %1135 = vmatmul.f32.gmra.mxu0 %v1134
  %v1136 = vpop.f32.mrf.mxu0
  %v1137 = vadd.f32 %v1042, %v1136
  %v1138 = vand.u32 %v669, 4294901760
  %1139 = vmatmul.f32.gmra.mxu0 %v1138
  %v1140 = vpop.f32.mrf.mxu0
  %v1141 = vadd.f32 %v1048, %v1140
  %v1142 = vand.u32 %v672, 4294901760
  %1143 = vmatmul.f32.gmra.mxu0 %v1142
  %v1144 = vpop.f32.mrf.mxu0
  %v1145 = vadd.f32 %v1054, %v1144
  %v1146 = vand.u32 %v675, 4294901760
  %1147 = vmatmul.f32.gmra.mxu0 %v1146
  %v1148 = vpop.f32.mrf.mxu0
  %v1149 = vadd.f32 %v1060, %v1148
  %v1150 = vand.u32 %v678, 4294901760
  %1151 = vmatmul.f32.gmra.mxu0 %v1150
  %v1152 = vpop.f32.mrf.mxu0
  %v1153 = vadd.f32 %v1066, %v1152
  %1154 = vdwg.mxu0
  %1155 = vmatpush.msra.mxu0 0.0
  %1156 = vmatpush.msra.mxu0 0.0
  %1157 = vmatpush.msra.mxu0 0.0
  %1158 = vmatpush.msra.mxu0 0.0
  %1159 = vmatpush.msra.mxu0 0.0
  %1160 = vmatpush.msra.mxu0 0.0
  %v1161 = vand.u32 %v598, 4294901760
  %1162 = vmatpush.msra.mxu0 %v1161
  %v1163 = vand.u32 %v597, 4294901760
  %1164 = vmatpush.msra.mxu0 %v1163
  %v1165 = vand.u32 %v596, 4294901760
  %1166 = vmatpush.msra.mxu0 %v1165
  %v1167 = vand.u32 %v595, 4294901760
  %1168 = vmatpush.msra.mxu0 %v1167
  %v1169 = vand.u32 %v594, 4294901760
  %1170 = vmatpush.msra.mxu0 %v1169
  %v1171 = vand.u32 %v593, 4294901760
  %1172 = vmatpush.msra.mxu0 %v1171
  %v1173 = vand.u32 %v592, 4294901760
  %1174 = vmatpush.msra.mxu0 %v1173
  %v1175 = vand.u32 %v591, 4294901760
  %1176 = vmatpush.msra.mxu0 %v1175
  %v1177 = vand.u32 %v590, 4294901760
  %1178 = vmatpush.msra.mxu0 %v1177
  %v1179 = vand.u32 %v589, 4294901760
  %1180 = vmatpush.msra.mxu0 %v1179
  %v1181 = vand.u32 %v651, 4294901760
  %1182 = vmatmul.f32.gmra.mxu0 %v1181
  %v1183 = vpop.f32.mrf.mxu0
  %v1184 = vadd.f32 %v1117, %v1183
  %v1185 = vand.u32 %v654, 4294901760
  %1186 = vmatmul.f32.gmra.mxu0 %v1185
  %v1187 = vpop.f32.mrf.mxu0
  %v1188 = vadd.f32 %v1121, %v1187
  %v1189 = vand.u32 %v657, 4294901760
  %1190 = vmatmul.f32.gmra.mxu0 %v1189
  %v1191 = vpop.f32.mrf.mxu0
  %v1192 = vadd.f32 %v1125, %v1191
  %v1193 = vand.u32 %v660, 4294901760
  %1194 = vmatmul.f32.gmra.mxu0 %v1193
  %v1195 = vpop.f32.mrf.mxu0
  %v1196 = vadd.f32 %v1129, %v1195
  %v1197 = vand.u32 %v663, 4294901760
  %1198 = vmatmul.f32.gmra.mxu0 %v1197
  %v1199 = vpop.f32.mrf.mxu0
  %v1200 = vadd.f32 %v1133, %v1199
  %v1201 = vand.u32 %v666, 4294901760
  %1202 = vmatmul.f32.gmra.mxu0 %v1201
  %v1203 = vpop.f32.mrf.mxu0
  %v1204 = vadd.f32 %v1137, %v1203
  %v1205 = vand.u32 %v669, 4294901760
  %1206 = vmatmul.f32.gmra.mxu0 %v1205
  %v1207 = vpop.f32.mrf.mxu0
  %v1208 = vadd.f32 %v1141, %v1207
  %v1209 = vand.u32 %v672, 4294901760
  %1210 = vmatmul.f32.gmra.mxu0 %v1209
  %v1211 = vpop.f32.mrf.mxu0
  %v1212 = vadd.f32 %v1145, %v1211
  %v1213 = vand.u32 %v675, 4294901760
  %1214 = vmatmul.f32.gmra.mxu0 %v1213
  %v1215 = vpop.f32.mrf.mxu0
  %v1216 = vadd.f32 %v1149, %v1215
  %v1217 = vand.u32 %v678, 4294901760
  %1218 = vmatmul.f32.gmra.mxu0 %v1217
  %v1219 = vpop.f32.mrf.mxu0
  %v1220 = vadd.f32 %v1153, %v1219
  %1221 = vdwg.mxu0
  %v1222 = vmax.f32 %v1184, 0.0
  %v1223 = vmax.f32 %v1188, 0.0
  %v1224 = vmax.f32 %v1192, 0.0
  %v1225 = vmax.f32 %v1196, 0.0
  %v1226 = vmax.f32 %v1200, 0.0
  %v1227 = vmax.f32 %v1204, 0.0
  %v1228 = vmax.f32 %v1208, 0.0
  %v1229 = vmax.f32 %v1212, 0.0
  %v1230 = vmax.f32 %v1216, 0.0
  %v1231 = vmax.f32 %v1220, 0.0
  %1233 = vset.pattern.permute.xlu0 0
  %1234 = vperm.xlu0 %1233, %v67
  %v1235 = vpop.permute.xlu0 %1234
  %v1238 = vsel %vm649, %v66, 0
  %1240 = vmatpush.msra.mxu0 0.0
  %1241 = vmatpush.msra.mxu0 0.0
  %1242 = vmatpush.msra.mxu0 0.0
  %1243 = vmatpush.msra.mxu0 0.0
  %1244 = vmatpush.msra.mxu0 0.0
  %1245 = vmatpush.msra.mxu0 0.0
  %v1246 = vand.u32 %v1231, 4294901760
  %1247 = vmatpush.msra.mxu0 %v1246
  %v1248 = vand.u32 %v1230, 4294901760
  %1249 = vmatpush.msra.mxu0 %v1248
  %v1250 = vand.u32 %v1229, 4294901760
  %1251 = vmatpush.msra.mxu0 %v1250
  %v1252 = vand.u32 %v1228, 4294901760
  %1253 = vmatpush.msra.mxu0 %v1252
  %v1254 = vand.u32 %v1227, 4294901760
  %1255 = vmatpush.msra.mxu0 %v1254
  %v1256 = vand.u32 %v1226, 4294901760
  %1257 = vmatpush.msra.mxu0 %v1256
  %v1258 = vand.u32 %v1225, 4294901760
  %1259 = vmatpush.msra.mxu0 %v1258
  %v1260 = vand.u32 %v1224, 4294901760
  %1261 = vmatpush.msra.mxu0 %v1260
  %v1262 = vand.u32 %v1223, 4294901760
  %1263 = vmatpush.msra.mxu0 %v1262
  %v1264 = vand.u32 %v1222, 4294901760
  %1265 = vmatpush.msra.mxu0 %v1264
  %v1266 = vand.u32 %v1238, 4294901760
  %v1267 = vsub.f32 %v1238, %v1266
  %v1268 = vand.u32 %v1267, 4294901760
  %v1269 = vsub.f32 %v1267, %v1268
  %v1270 = vand.u32 %v1269, 4294901760
  %1271 = vmatmul.f32.gmra.mxu0 %v1270
  %v1272 = vpop.f32.mrf.mxu0
  %v1273 = vadd.f32 %v1235, %v1272
  %1274 = vdwg.mxu0
  %1275 = vmatpush.msra.mxu0 0.0
  %1276 = vmatpush.msra.mxu0 0.0
  %1277 = vmatpush.msra.mxu0 0.0
  %1278 = vmatpush.msra.mxu0 0.0
  %1279 = vmatpush.msra.mxu0 0.0
  %1280 = vmatpush.msra.mxu0 0.0
  %v1281 = vand.u32 %v1231, 4294901760
  %v1282 = vsub.f32 %v1231, %v1281
  %v1283 = vand.u32 %v1282, 4294901760
  %v1284 = vsub.f32 %v1282, %v1283
  %v1285 = vand.u32 %v1284, 4294901760
  %1286 = vmatpush.msra.mxu0 %v1285
  %v1287 = vand.u32 %v1230, 4294901760
  %v1288 = vsub.f32 %v1230, %v1287
  %v1289 = vand.u32 %v1288, 4294901760
  %v1290 = vsub.f32 %v1288, %v1289
  %v1291 = vand.u32 %v1290, 4294901760
  %1292 = vmatpush.msra.mxu0 %v1291
  %v1293 = vand.u32 %v1229, 4294901760
  %v1294 = vsub.f32 %v1229, %v1293
  %v1295 = vand.u32 %v1294, 4294901760
  %v1296 = vsub.f32 %v1294, %v1295
  %v1297 = vand.u32 %v1296, 4294901760
  %1298 = vmatpush.msra.mxu0 %v1297
  %v1299 = vand.u32 %v1228, 4294901760
  %v1300 = vsub.f32 %v1228, %v1299
  %v1301 = vand.u32 %v1300, 4294901760
  %v1302 = vsub.f32 %v1300, %v1301
  %v1303 = vand.u32 %v1302, 4294901760
  %1304 = vmatpush.msra.mxu0 %v1303
  %v1305 = vand.u32 %v1227, 4294901760
  %v1306 = vsub.f32 %v1227, %v1305
  %v1307 = vand.u32 %v1306, 4294901760
  %v1308 = vsub.f32 %v1306, %v1307
  %v1309 = vand.u32 %v1308, 4294901760
  %1310 = vmatpush.msra.mxu0 %v1309
  %v1311 = vand.u32 %v1226, 4294901760
  %v1312 = vsub.f32 %v1226, %v1311
  %v1313 = vand.u32 %v1312, 4294901760
  %v1314 = vsub.f32 %v1312, %v1313
  %v1315 = vand.u32 %v1314, 4294901760
  %1316 = vmatpush.msra.mxu0 %v1315
  %v1317 = vand.u32 %v1225, 4294901760
  %v1318 = vsub.f32 %v1225, %v1317
  %v1319 = vand.u32 %v1318, 4294901760
  %v1320 = vsub.f32 %v1318, %v1319
  %v1321 = vand.u32 %v1320, 4294901760
  %1322 = vmatpush.msra.mxu0 %v1321
  %v1323 = vand.u32 %v1224, 4294901760
  %v1324 = vsub.f32 %v1224, %v1323
  %v1325 = vand.u32 %v1324, 4294901760
  %v1326 = vsub.f32 %v1324, %v1325
  %v1327 = vand.u32 %v1326, 4294901760
  %1328 = vmatpush.msra.mxu0 %v1327
  %v1329 = vand.u32 %v1223, 4294901760
  %v1330 = vsub.f32 %v1223, %v1329
  %v1331 = vand.u32 %v1330, 4294901760
  %v1332 = vsub.f32 %v1330, %v1331
  %v1333 = vand.u32 %v1332, 4294901760
  %1334 = vmatpush.msra.mxu0 %v1333
  %v1335 = vand.u32 %v1222, 4294901760
  %v1336 = vsub.f32 %v1222, %v1335
  %v1337 = vand.u32 %v1336, 4294901760
  %v1338 = vsub.f32 %v1336, %v1337
  %v1339 = vand.u32 %v1338, 4294901760
  %1340 = vmatpush.msra.mxu0 %v1339
  %v1341 = vand.u32 %v1238, 4294901760
  %1342 = vmatmul.f32.gmra.mxu0 %v1341
  %v1343 = vpop.f32.mrf.mxu0
  %v1344 = vadd.f32 %v1273, %v1343
  %1345 = vdwg.mxu0
  %1346 = vmatpush.msra.mxu0 0.0
  %1347 = vmatpush.msra.mxu0 0.0
  %1348 = vmatpush.msra.mxu0 0.0
  %1349 = vmatpush.msra.mxu0 0.0
  %1350 = vmatpush.msra.mxu0 0.0
  %1351 = vmatpush.msra.mxu0 0.0
  %v1352 = vand.u32 %v1231, 4294901760
  %v1353 = vsub.f32 %v1231, %v1352
  %1354 = vmatpush.msra.mxu0 %v1353
  %v1355 = vand.u32 %v1230, 4294901760
  %v1356 = vsub.f32 %v1230, %v1355
  %1357 = vmatpush.msra.mxu0 %v1356
  %v1358 = vand.u32 %v1229, 4294901760
  %v1359 = vsub.f32 %v1229, %v1358
  %1360 = vmatpush.msra.mxu0 %v1359
  %v1361 = vand.u32 %v1228, 4294901760
  %v1362 = vsub.f32 %v1228, %v1361
  %1363 = vmatpush.msra.mxu0 %v1362
  %v1364 = vand.u32 %v1227, 4294901760
  %v1365 = vsub.f32 %v1227, %v1364
  %1366 = vmatpush.msra.mxu0 %v1365
  %v1367 = vand.u32 %v1226, 4294901760
  %v1368 = vsub.f32 %v1226, %v1367
  %1369 = vmatpush.msra.mxu0 %v1368
  %v1370 = vand.u32 %v1225, 4294901760
  %v1371 = vsub.f32 %v1225, %v1370
  %1372 = vmatpush.msra.mxu0 %v1371
  %v1373 = vand.u32 %v1224, 4294901760
  %v1374 = vsub.f32 %v1224, %v1373
  %1375 = vmatpush.msra.mxu0 %v1374
  %v1376 = vand.u32 %v1223, 4294901760
  %v1377 = vsub.f32 %v1223, %v1376
  %1378 = vmatpush.msra.mxu0 %v1377
  %v1379 = vand.u32 %v1222, 4294901760
  %v1380 = vsub.f32 %v1222, %v1379
  %1381 = vmatpush.msra.mxu0 %v1380
  %v1382 = vand.u32 %v1238, 4294901760
  %v1383 = vsub.f32 %v1238, %v1382
  %1384 = vmatmul.f32.gmra.mxu0 %v1383
  %v1385 = vpop.f32.mrf.mxu0
  %v1386 = vadd.f32 %v1344, %v1385
  %1387 = vdwg.mxu0
  %1388 = vmatpush.msra.mxu0 0.0
  %1389 = vmatpush.msra.mxu0 0.0
  %1390 = vmatpush.msra.mxu0 0.0
  %1391 = vmatpush.msra.mxu0 0.0
  %1392 = vmatpush.msra.mxu0 0.0
  %1393 = vmatpush.msra.mxu0 0.0
  %v1394 = vand.u32 %v1231, 4294901760
  %1395 = vmatpush.msra.mxu0 %v1394
  %v1396 = vand.u32 %v1230, 4294901760
  %1397 = vmatpush.msra.mxu0 %v1396
  %v1398 = vand.u32 %v1229, 4294901760
  %1399 = vmatpush.msra.mxu0 %v1398
  %v1400 = vand.u32 %v1228, 4294901760
  %1401 = vmatpush.msra.mxu0 %v1400
  %v1402 = vand.u32 %v1227, 4294901760
  %1403 = vmatpush.msra.mxu0 %v1402
  %v1404 = vand.u32 %v1226, 4294901760
  %1405 = vmatpush.msra.mxu0 %v1404
  %v1406 = vand.u32 %v1225, 4294901760
  %1407 = vmatpush.msra.mxu0 %v1406
  %v1408 = vand.u32 %v1224, 4294901760
  %1409 = vmatpush.msra.mxu0 %v1408
  %v1410 = vand.u32 %v1223, 4294901760
  %1411 = vmatpush.msra.mxu0 %v1410
  %v1412 = vand.u32 %v1222, 4294901760
  %1413 = vmatpush.msra.mxu0 %v1412
  %v1414 = vand.u32 %v1238, 4294901760
  %v1415 = vsub.f32 %v1238, %v1414
  %v1416 = vand.u32 %v1415, 4294901760
  %1417 = vmatmul.f32.gmra.mxu0 %v1416
  %v1418 = vpop.f32.mrf.mxu0
  %v1419 = vadd.f32 %v1386, %v1418
  %1420 = vdwg.mxu0
  %1421 = vmatpush.msra.mxu0 0.0
  %1422 = vmatpush.msra.mxu0 0.0
  %1423 = vmatpush.msra.mxu0 0.0
  %1424 = vmatpush.msra.mxu0 0.0
  %1425 = vmatpush.msra.mxu0 0.0
  %1426 = vmatpush.msra.mxu0 0.0
  %v1427 = vand.u32 %v1231, 4294901760
  %v1428 = vsub.f32 %v1231, %v1427
  %v1429 = vand.u32 %v1428, 4294901760
  %1430 = vmatpush.msra.mxu0 %v1429
  %v1431 = vand.u32 %v1230, 4294901760
  %v1432 = vsub.f32 %v1230, %v1431
  %v1433 = vand.u32 %v1432, 4294901760
  %1434 = vmatpush.msra.mxu0 %v1433
  %v1435 = vand.u32 %v1229, 4294901760
  %v1436 = vsub.f32 %v1229, %v1435
  %v1437 = vand.u32 %v1436, 4294901760
  %1438 = vmatpush.msra.mxu0 %v1437
  %v1439 = vand.u32 %v1228, 4294901760
  %v1440 = vsub.f32 %v1228, %v1439
  %v1441 = vand.u32 %v1440, 4294901760
  %1442 = vmatpush.msra.mxu0 %v1441
  %v1443 = vand.u32 %v1227, 4294901760
  %v1444 = vsub.f32 %v1227, %v1443
  %v1445 = vand.u32 %v1444, 4294901760
  %1446 = vmatpush.msra.mxu0 %v1445
  %v1447 = vand.u32 %v1226, 4294901760
  %v1448 = vsub.f32 %v1226, %v1447
  %v1449 = vand.u32 %v1448, 4294901760
  %1450 = vmatpush.msra.mxu0 %v1449
  %v1451 = vand.u32 %v1225, 4294901760
  %v1452 = vsub.f32 %v1225, %v1451
  %v1453 = vand.u32 %v1452, 4294901760
  %1454 = vmatpush.msra.mxu0 %v1453
  %v1455 = vand.u32 %v1224, 4294901760
  %v1456 = vsub.f32 %v1224, %v1455
  %v1457 = vand.u32 %v1456, 4294901760
  %1458 = vmatpush.msra.mxu0 %v1457
  %v1459 = vand.u32 %v1223, 4294901760
  %v1460 = vsub.f32 %v1223, %v1459
  %v1461 = vand.u32 %v1460, 4294901760
  %1462 = vmatpush.msra.mxu0 %v1461
  %v1463 = vand.u32 %v1222, 4294901760
  %v1464 = vsub.f32 %v1222, %v1463
  %v1465 = vand.u32 %v1464, 4294901760
  %1466 = vmatpush.msra.mxu0 %v1465
  %v1467 = vand.u32 %v1238, 4294901760
  %1468 = vmatmul.f32.gmra.mxu0 %v1467
  %v1469 = vpop.f32.mrf.mxu0
  %v1470 = vadd.f32 %v1419, %v1469
  %1471 = vdwg.mxu0
  %1472 = vmatpush.msra.mxu0 0.0
  %1473 = vmatpush.msra.mxu0 0.0
  %1474 = vmatpush.msra.mxu0 0.0
  %1475 = vmatpush.msra.mxu0 0.0
  %1476 = vmatpush.msra.mxu0 0.0
  %1477 = vmatpush.msra.mxu0 0.0
  %v1478 = vand.u32 %v1231, 4294901760
  %1479 = vmatpush.msra.mxu0 %v1478
  %v1480 = vand.u32 %v1230, 4294901760
  %1481 = vmatpush.msra.mxu0 %v1480
  %v1482 = vand.u32 %v1229, 4294901760
  %1483 = vmatpush.msra.mxu0 %v1482
  %v1484 = vand.u32 %v1228, 4294901760
  %1485 = vmatpush.msra.mxu0 %v1484
  %v1486 = vand.u32 %v1227, 4294901760
  %1487 = vmatpush.msra.mxu0 %v1486
  %v1488 = vand.u32 %v1226, 4294901760
  %1489 = vmatpush.msra.mxu0 %v1488
  %v1490 = vand.u32 %v1225, 4294901760
  %1491 = vmatpush.msra.mxu0 %v1490
  %v1492 = vand.u32 %v1224, 4294901760
  %1493 = vmatpush.msra.mxu0 %v1492
  %v1494 = vand.u32 %v1223, 4294901760
  %1495 = vmatpush.msra.mxu0 %v1494
  %v1496 = vand.u32 %v1222, 4294901760
  %1497 = vmatpush.msra.mxu0 %v1496
  %v1498 = vand.u32 %v1238, 4294901760
  %1499 = vmatmul.f32.gmra.mxu0 %v1498
  %v1500 = vpop.f32.mrf.mxu0
  %v1501 = vadd.f32 %v1470, %v1500
  %1502 = vdwg.mxu0
  %1503 = vst [vmem:[%s7] sm:$0xff] %v1501
  // Predicated region
  $region30: #{mine2_forward.1} parent=0 // pred_check
    _
  $region31: #{mine2_forward.1} parent=0 // pred_check_branch
    %1505 = sbr.rel (0) target = $region33
  $region32: #{mine2_forward.1} parent=0 // pred_region
    _
  $region33: #{mine2_forward.1} parent=0 // pred_fallthru
    _
  // Predicated region
  $region34: #{mine2_forward.1} parent=0 // pred_check
    _
  $region35: #{mine2_forward.1} parent=0 // pred_check_branch
    %1507 = sbr.rel (0) target = $region37
  $region36: #{mine2_forward.1} parent=0 // pred_region
    _
  $region37: #{mine2_forward.1} parent=0 // pred_fallthru
    _

</llo_original>
